<compile_context>
chip_gen: v7x
topology: tpu7x:2x2x1
jax: 0.10.0
libtpu: 0.0.40
codegen_flags: <defaults>
</compile_context>

<pallas_src>
import functools

import jax
import jax.numpy as jnp
from jax.experimental import pallas as pl
from jax.experimental.pallas import tpu as pltpu


# ----------------------------- shared math helpers ----------------------------

def _round_up(n, m):
    return ((n + m - 1) // m) * m


def _silu(x):
    return x * jax.nn.sigmoid(x)


def _layernorm_1pass(x, gamma, beta, n, eps=1e-5):
    """One-pass LayerNorm: E[x], E[x^2] via two back-to-back lane reductions.

    Matches PyTorch nn.LayerNorm (biased variance, eps=1e-5) in f32 math.
    `n` is the TRUE feature count: when the trailing lanes of x / gamma / beta
    are zero-padded, dividing the raw sums by n gives exact masked statistics
    (zero pads contribute nothing to sum(x) or sum(x*x)), so no slice or
    concatenate is needed around a lane-padded feature axis.
    """
    inv_n = 1.0 / float(n)
    mu = jnp.sum(x, axis=-1, keepdims=True) * inv_n
    ex2 = jnp.sum(x * x, axis=-1, keepdims=True) * inv_n
    var = ex2 - mu * mu
    return (x - mu) * jax.lax.rsqrt(var + eps) * gamma + beta


def _layernorm_ref(x, gamma, beta, eps=1e-5):
    # Classic two-pass form, used only by the pure-JAX reference.
    mu = jnp.mean(x, axis=-1, keepdims=True)
    var = jnp.mean(jnp.square(x - mu), axis=-1, keepdims=True)
    return (x - mu) * jax.lax.rsqrt(var + eps) * gamma + beta


# --------------------------------- kernel ------------------------------------

def _translator_kernel(x_ref, w_ref, v_ref, wo_ref, vo_ref, out_ref, *,
                       num_layers, target_dim):
    """One batch tile through the whole translator.

    x_ref  : (tile, H)        bf16, source features zero-padded to H
    w_ref  : (n_mats, H, H)   bf16, packed hidden Linear weights
    v_ref  : (n_vecs, H)      f32,  packed hidden biases / LN gammas / betas
    wo_ref : (H, T_out)       bf16, output Linear weight, cols zero-padded
    vo_ref : (3, T_out)       f32,  output bias / LN gamma / LN beta (padded)
    out_ref: (tile, T_out)    T_out = round_up(target_dim, 128), lane-dense
    """
    L = num_layers
    T = target_dim
    H = w_ref.shape[1]
    has_central = (w_ref.shape[0] == 2 * L + 2)   # mirrors `num_layers > 1`

    def _mm(a, w):
        # bf16 MXU operands, f32 accumulation.
        return jnp.dot(a.astype(jnp.bfloat16), w,
                       preferred_element_type=jnp.float32)

    x = x_ref[...]                                           # (tile, H) bf16

    # ---- input adapter: Linear -> LayerNorm -> SiLU -> (Dropout = id) ----
    h = _mm(x, w_ref[0]) + v_ref[0]
    h = _silu(_layernorm_1pass(h, v_ref[1], v_ref[2], H))

    # ---- backbone: residual blocks (static unroll) ----
    for l in range(L):
        base = 3 + 6 * l
        res = h
        t = _layernorm_1pass(h, v_ref[base + 0], v_ref[base + 1], H)
        t = _silu(_mm(t, w_ref[1 + 2 * l]) + v_ref[base + 2])
        t = _layernorm_1pass(t, v_ref[base + 3], v_ref[base + 4], H)
        t = _mm(t, w_ref[2 + 2 * l]) + v_ref[base + 5]
        h = t + res

    # ---- central projection (Identity when num_layers <= 1) ----
    if has_central:
        c0 = 3 + 6 * L
        h = _mm(h, w_ref[2 * L + 1]) + v_ref[c0 + 0]
        h = _silu(_layernorm_1pass(h, v_ref[c0 + 1], v_ref[c0 + 2], H))

    # ---- output adapter at full 128-lane width (no slice / no concat) ----
    # Pad columns of wo / pad lanes of bias are zero, so y's pad lanes are 0;
    # the masked LN (divide by true T, gamma/beta pads = 0) keeps them 0 and
    # the store stays one unmasked lane-dense slab.
    y = _mm(h, wo_ref[...]) + vo_ref[0]
    y = _layernorm_1pass(y, vo_ref[1], vo_ref[2], T)
    out_ref[...] = y.astype(out_ref.dtype)


# --------------------------- parameter packing --------------------------------

def pack_params(params):
    """Pack the PyTorch-layout parameter dict into four dense kernel operands.

    W  : (n_mats, H, H) bf16 — w_in (rows zero-padded S->H), per-layer w1/w2,
         optional wc.
    V  : (n_vecs, H)    f32  — b_in,g_in,be_in, per-layer (g1,be1,b1,g2,be2,b2),
         optional (bc,gc,bec).
    Wo : (H, T_out)     bf16 — wo, cols zero-padded T -> round_up(T,128).
    Vo : (3, T_out)     f32  — bo, go, beo zero-padded to T_out.
    """
    S, H = params["w_in"].shape
    T = params["wo"].shape[1]
    L = params["w1"].shape[0]
    T_out = _round_up(T, 128)
    assert S <= H, "packing assumes source_dim <= hidden_dim"
    has_central = ("wc" in params) and (L > 1)

    mats = [jnp.pad(params["w_in"], ((0, H - S), (0, 0)))]
    for l in range(L):
        mats += [params["w1"][l], params["w2"][l]]
    if has_central:
        mats.append(params["wc"])
    W = jnp.stack(mats).astype(jnp.bfloat16)

    vecs = [params["b_in"], params["g_in"], params["be_in"]]
    for l in range(L):
        vecs += [params["g1"][l], params["be1"][l], params["b1"][l],
                 params["g2"][l], params["be2"][l], params["b2"][l]]
    if has_central:
        vecs += [params["bc"], params["gc"], params["bec"]]
    V = jnp.stack([jnp.asarray(v, jnp.float32) for v in vecs])

    Wo = jnp.pad(params["wo"], ((0, 0), (0, T_out - T))).astype(jnp.bfloat16)
    Vo = jnp.stack([jnp.pad(jnp.asarray(params[k], jnp.float32), (0, T_out - T))
                    for k in ("bo", "go", "beo")])
    return W, V, Wo, Vo


# --------------------------------- wrapper -----------------------------------

@functools.partial(jax.jit, static_argnames=("num_layers", "target_dim",
                                             "batch_tile", "out_dtype"))
def aicube_translate(x, W, V, Wo, Vo, *, num_layers, target_dim,
                     batch_tile=None, out_dtype=jnp.float32):
    B, S = x.shape
    n_w, Hp, _ = W.shape
    T_out = Wo.shape[1]
    assert T_out % 128 == 0 and T_out >= target_dim

    if batch_tile is None:
        Bp8 = _round_up(B, 8)
        # Cap the tile by an ~8 MiB budget for the double-buffered x/out tiles
        # (x in bf16 + out), bounded above by 2048 rows.
        row_bytes = 2 * (Hp * 2 + T_out * 4)
        cap = min(2048, max(256, ((8 << 20) // row_bytes) // 8 * 8))
        if Bp8 <= cap:
            batch_tile = Bp8            # one big step: no grid bookkeeping
        else:
            # >= 2 (even) large grid steps so the "parallel" batch axis shards
            # evenly across v7x's two TensorCores; steps stay large for v5e/v6e.
            n_steps = -(-Bp8 // cap)
            n_steps = max(2, n_steps + (n_steps % 2))
            batch_tile = min(cap, _round_up(-(-Bp8 // n_steps), 256))
    else:
        batch_tile = _round_up(batch_tile, 8)
    Bp = _round_up(B, batch_tile)

    # Single pad op: batch -> tile multiple, source features -> Hp (the extra
    # weight rows in W[0] are zero).  bf16 halves the activation DMA traffic.
    x_p = jnp.pad(x, ((0, Bp - B), (0, Hp - S))).astype(jnp.bfloat16)

    kernel = functools.partial(_translator_kernel,
                               num_layers=num_layers, target_dim=target_dim)

    # Explicit VMEM budget: params single-buffered, x/out tiles double-buffered,
    # plus f32 activation headroom.  Clamped to v7x's 64 MiB physical VMEM.
    w_bytes = (int(W.size) + int(Wo.size)) * 2
    v_bytes = (int(V.size) + int(Vo.size)) * 4
    tile_bytes = 2 * batch_tile * (Hp * 2 + T_out * 4)
    act_bytes = 8 * batch_tile * Hp * 4
    vmem_limit = int(min(64 << 20,
                         max(32 << 20,
                             w_bytes + v_bytes + tile_bytes + act_bytes
                             + (8 << 20))))

    # Advisory cost hint for the surrounding XLA schedule.
    flops = 2 * Bp * Hp * (Hp * n_w + T_out)
    transcendentals = Bp * Hp * (num_layers + 2)
    bytes_accessed = (x_p.size * 2 + w_bytes + v_bytes
                      + Bp * T_out * jnp.dtype(out_dtype).itemsize)

    out = pl.pallas_call(
        kernel,
        out_shape=jax.ShapeDtypeStruct((Bp, T_out), out_dtype),
        grid_spec=pltpu.PrefetchScalarGridSpec(
            num_scalar_prefetch=0,
            grid=(Bp // batch_tile,),
            in_specs=[
                pl.BlockSpec((batch_tile, Hp), lambda i: (i, 0)),
                # Grid-invariant packed parameters: whole-array blocks,
                # single-buffered (they are never re-fetched across steps).
                pl.BlockSpec(W.shape, lambda i: (0, 0, 0),
                             pipeline_mode=pl.Buffered(1)),
                pl.BlockSpec(V.shape, lambda i: (0, 0),
                             pipeline_mode=pl.Buffered(1)),
                pl.BlockSpec(Wo.shape, lambda i: (0, 0),
                             pipeline_mode=pl.Buffered(1)),
                pl.BlockSpec(Vo.shape, lambda i: (0, 0),
                             pipeline_mode=pl.Buffered(1)),
            ],
            out_specs=pl.BlockSpec((batch_tile, T_out), lambda i: (i, 0)),
        ),
        compiler_params=pltpu.CompilerParams(
            dimension_semantics=("parallel",),
            vmem_limit_bytes=vmem_limit,
        ),
        cost_estimate=pl.CostEstimate(
            flops=int(flops),
            transcendentals=int(transcendentals),
            bytes_accessed=int(bytes_accessed),
        ),
    )(x_p, W, V, Wo, Vo)

    return out[:B, :target_dim]


# --------------------------- deterministic params -----------------------------

def _xavier_uniform(key, fan_in, fan_out):
    bound = jnp.sqrt(6.0 / (fan_in + fan_out))
    return jax.random.uniform(
        key, (fan_in, fan_out), dtype=jnp.float32, minval=-bound, maxval=bound)


def init_params(key, source_dim, target_dim, hidden_dim, num_layers):
    ks = list(jax.random.split(key, 3 + 2 * num_layers))
    p = {}
    # input adapter
    p["w_in"] = _xavier_uniform(ks.pop(0), source_dim, hidden_dim)
    p["b_in"] = jnp.zeros((hidden_dim,), jnp.float32)
    p["g_in"] = jnp.ones((hidden_dim,), jnp.float32)
    p["be_in"] = jnp.zeros((hidden_dim,), jnp.float32)
    # backbone residual blocks
    p["w1"] = jnp.stack([_xavier_uniform(ks.pop(0), hidden_dim, hidden_dim)
                         for _ in range(num_layers)])
    p["w2"] = jnp.stack([_xavier_uniform(ks.pop(0), hidden_dim, hidden_dim)
                         for _ in range(num_layers)])
    p["b1"] = jnp.zeros((num_layers, hidden_dim), jnp.float32)
    p["b2"] = jnp.zeros((num_layers, hidden_dim), jnp.float32)
    p["g1"] = jnp.ones((num_layers, hidden_dim), jnp.float32)
    p["be1"] = jnp.zeros((num_layers, hidden_dim), jnp.float32)
    p["g2"] = jnp.ones((num_layers, hidden_dim), jnp.float32)
    p["be2"] = jnp.zeros((num_layers, hidden_dim), jnp.float32)
    # central projection (present because num_layers > 1)
    p["wc"] = _xavier_uniform(ks.pop(0), hidden_dim, hidden_dim)
    p["bc"] = jnp.zeros((hidden_dim,), jnp.float32)
    p["gc"] = jnp.ones((hidden_dim,), jnp.float32)
    p["bec"] = jnp.zeros((hidden_dim,), jnp.float32)
    # output adapter
    p["wo"] = _xavier_uniform(ks.pop(0), hidden_dim, target_dim)
    p["bo"] = jnp.zeros((target_dim,), jnp.float32)
    p["go"] = jnp.ones((target_dim,), jnp.float32)
    p["beo"] = jnp.zeros((target_dim,), jnp.float32)
    return p


# ------------------------------ pure-JAX reference ----------------------------

def reference_forward(x, p, matmul_dtype=jnp.float32):
    """Reference forward.  matmul_dtype=bf16 mirrors the kernel's MXU numerics."""
    def mm(a, w):
        return jnp.dot(a.astype(matmul_dtype), w.astype(matmul_dtype),
                       preferred_element_type=jnp.float32)

    h = mm(x, p["w_in"]) + p["b_in"]
    h = _silu(_layernorm_ref(h, p["g_in"], p["be_in"]))
    L = p["w1"].shape[0]
    for l in range(L):
        res = h
        t = _layernorm_ref(h, p["g1"][l], p["be1"][l])
        t = _silu(mm(t, p["w1"][l]) + p["b1"][l])
        t = _layernorm_ref(t, p["g2"][l], p["be2"][l])
        t = mm(t, p["w2"][l]) + p["b2"][l]
        h = t + res
    if L > 1:
        h = _silu(_layernorm_ref(mm(h, p["wc"]) + p["bc"], p["gc"], p["bec"]))
    y = _layernorm_ref(mm(h, p["wo"]) + p["bo"], p["go"], p["beo"])
    return y


# ----------------------------------- main -------------------------------------

if __name__ == "__main__":
    SOURCE_DIM = 48
    TARGET_DIM = 32
    HIDDEN_DIM = 64
    NUM_LAYERS = 3
    BATCH = 16

    key = jax.random.PRNGKey(0)
    k_x, k_p = jax.random.split(key)

    x = jax.random.normal(k_x, (BATCH, SOURCE_DIM), dtype=jnp.float32)
    params = init_params(k_p, SOURCE_DIM, TARGET_DIM, HIDDEN_DIM, NUM_LAYERS)
    W, V, Wo, Vo = pack_params(params)

    out = aicube_translate(x, W, V, Wo, Vo,
                           num_layers=NUM_LAYERS, target_dim=TARGET_DIM)
    out = jax.block_until_ready(out)

    # Tight check against a reference that mirrors the kernel's bf16-MXU math.
    ref_bf16 = reference_forward(x, params, matmul_dtype=jnp.bfloat16)
    # Looser sanity check against the pure-f32 reference (bf16 matmul error).
    ref_f32 = reference_forward(x, params, matmul_dtype=jnp.float32)

    assert out.shape == (BATCH, TARGET_DIM)
    assert jnp.allclose(out, ref_bf16, atol=5e-3, rtol=5e-3), \
        "mismatch vs bf16-matmul JAX reference"
    assert jnp.allclose(out, ref_f32, atol=1e-1, rtol=1e-1), \
        "mismatch vs f32 JAX reference"

    print("KERNEL_OK")
</pallas_src>

<mosaic_0001>
module attributes {stable_mosaic.version = 11 : i64} {
  func.func @_translator_kernel(%arg0: i32, %arg1: memref<16x64xbf16, #tpu.memory_space<vmem>>, %arg2: memref<8x64x64xbf16, #tpu.memory_space<vmem>>, %arg3: memref<24x64xf32, #tpu.memory_space<vmem>>, %arg4: memref<64x128xbf16, #tpu.memory_space<vmem>>, %arg5: memref<3x128xf32, #tpu.memory_space<vmem>>, %arg6: memref<16x128xf32, #tpu.memory_space<vmem>>) attributes {dimension_semantics = [#tpu.dimension_semantics<parallel>], iteration_bounds = array<i64: 1>, scalar_prefetch = 0 : i64, scratch_operands = 0 : i64, tpu.core_type = #tpu.core_type<tc>, window_params = [{transform_indices = @transform_0, window_bounds = array<i64: 16, 64>}, {pipeline_mode = #tpu.pipeline_mode<synchronous>, transform_indices = @transform_1, window_bounds = array<i64: 8, 64, 64>}, {pipeline_mode = #tpu.pipeline_mode<synchronous>, transform_indices = @transform_2, window_bounds = array<i64: 24, 64>}, {pipeline_mode = #tpu.pipeline_mode<synchronous>, transform_indices = @transform_3, window_bounds = array<i64: 64, 128>}, {pipeline_mode = #tpu.pipeline_mode<synchronous>, transform_indices = @transform_4, window_bounds = array<i64: 3, 128>}, {transform_indices = @transform_5, window_bounds = array<i64: 16, 128>}]} {
    %c0 = arith.constant 0 : index
    %c0_0 = arith.constant 0 : index
    %0 = vector.load %arg1[%c0, %c0_0] : memref<16x64xbf16, #tpu.memory_space<vmem>>, vector<16x64xbf16>
    %c0_1 = arith.constant 0 : index
    %c0_2 = arith.constant 0 : index
    %c0_3 = arith.constant 0 : index
    %1 = vector.load %arg2[%c0_1, %c0_2, %c0_3] : memref<8x64x64xbf16, #tpu.memory_space<vmem>>, vector<1x64x64xbf16>
    %2 = vector.shape_cast %1 : vector<1x64x64xbf16> to vector<64x64xbf16>
    %cst = arith.constant dense<0.000000e+00> : vector<16x64xf32>
    %3 = tpu.matmul %0, %2, %cst {dimension_numbers = #tpu.dot_dimension_numbers<[1], [0], [0], [1], [0, 0, 1, 1], [], []>} : vector<16x64xbf16>, vector<64x64xbf16>, vector<16x64xf32> -> vector<16x64xf32>
    %c0_4 = arith.constant 0 : index
    %c0_5 = arith.constant 0 : index
    %4 = vector.load %arg3[%c0_4, %c0_5] : memref<24x64xf32, #tpu.memory_space<vmem>>, vector<1x64xf32>
    %5 = vector.shape_cast %4 : vector<1x64xf32> to vector<64xf32>
    %6 = vector.shape_cast %5 : vector<64xf32> to vector<1x64xf32>
    %7 = vector.broadcast %6 : vector<1x64xf32> to vector<16x64xf32>
    %8 = arith.addf %3, %7 : vector<16x64xf32>
    %c1 = arith.constant 1 : index
    %c0_6 = arith.constant 0 : index
    %9 = vector.load %arg3[%c1, %c0_6] : memref<24x64xf32, #tpu.memory_space<vmem>>, vector<1x64xf32>
    %10 = vector.shape_cast %9 : vector<1x64xf32> to vector<64xf32>
    %c2 = arith.constant 2 : index
    %c0_7 = arith.constant 0 : index
    %11 = vector.load %arg3[%c2, %c0_7] : memref<24x64xf32, #tpu.memory_space<vmem>>, vector<1x64xf32>
    %12 = vector.shape_cast %11 : vector<1x64xf32> to vector<64xf32>
    %cst_8 = arith.constant dense<0.000000e+00> : vector<16xf32>
    %13 = vector.multi_reduction <add>, %8, %cst_8 [1] : vector<16x64xf32> to vector<16xf32>
    %14 = vector.shape_cast %13 : vector<16xf32> to vector<16x1xf32>
    %cst_9 = arith.constant 1.562500e-02 : f32
    %15 = vector.broadcast %cst_9 : f32 to vector<16x1xf32>
    %16 = arith.mulf %14, %15 : vector<16x1xf32>
    %17 = arith.mulf %8, %8 : vector<16x64xf32>
    %cst_10 = arith.constant dense<0.000000e+00> : vector<16xf32>
    %18 = vector.multi_reduction <add>, %17, %cst_10 [1] : vector<16x64xf32> to vector<16xf32>
    %19 = vector.shape_cast %18 : vector<16xf32> to vector<16x1xf32>
    %cst_11 = arith.constant 1.562500e-02 : f32
    %20 = vector.broadcast %cst_11 : f32 to vector<16x1xf32>
    %21 = arith.mulf %19, %20 : vector<16x1xf32>
    %22 = arith.mulf %16, %16 : vector<16x1xf32>
    %23 = arith.subf %21, %22 : vector<16x1xf32>
    %24 = vector.broadcast %16 : vector<16x1xf32> to vector<16x64xf32>
    %25 = arith.subf %8, %24 : vector<16x64xf32>
    %cst_12 = arith.constant 9.99999974E-6 : f32
    %26 = vector.broadcast %cst_12 : f32 to vector<16x1xf32>
    %27 = arith.addf %23, %26 : vector<16x1xf32>
    %28 = math.rsqrt %27 : vector<16x1xf32>
    %29 = vector.broadcast %28 : vector<16x1xf32> to vector<16x64xf32>
    %30 = arith.mulf %25, %29 : vector<16x64xf32>
    %31 = vector.shape_cast %10 : vector<64xf32> to vector<1x64xf32>
    %32 = vector.broadcast %31 : vector<1x64xf32> to vector<16x64xf32>
    %33 = arith.mulf %30, %32 : vector<16x64xf32>
    %34 = vector.shape_cast %12 : vector<64xf32> to vector<1x64xf32>
    %35 = vector.broadcast %34 : vector<1x64xf32> to vector<16x64xf32>
    %36 = arith.addf %33, %35 : vector<16x64xf32>
    %37 = arith.negf %36 : vector<16x64xf32>
    %38 = math.exp %37 : vector<16x64xf32>
    %cst_13 = arith.constant 1.000000e+00 : f32
    %39 = vector.broadcast %cst_13 : f32 to vector<16x64xf32>
    %40 = arith.addf %39, %38 : vector<16x64xf32>
    %41 = arith.divf %39, %40 : vector<16x64xf32>
    %42 = arith.mulf %36, %41 : vector<16x64xf32>
    %c3 = arith.constant 3 : index
    %c0_14 = arith.constant 0 : index
    %43 = vector.load %arg3[%c3, %c0_14] : memref<24x64xf32, #tpu.memory_space<vmem>>, vector<1x64xf32>
    %44 = vector.shape_cast %43 : vector<1x64xf32> to vector<64xf32>
    %c4 = arith.constant 4 : index
    %c0_15 = arith.constant 0 : index
    %45 = vector.load %arg3[%c4, %c0_15] : memref<24x64xf32, #tpu.memory_space<vmem>>, vector<1x64xf32>
    %46 = vector.shape_cast %45 : vector<1x64xf32> to vector<64xf32>
    %cst_16 = arith.constant dense<0.000000e+00> : vector<16xf32>
    %47 = vector.multi_reduction <add>, %42, %cst_16 [1] : vector<16x64xf32> to vector<16xf32>
    %48 = vector.shape_cast %47 : vector<16xf32> to vector<16x1xf32>
    %cst_17 = arith.constant 1.562500e-02 : f32
    %49 = vector.broadcast %cst_17 : f32 to vector<16x1xf32>
    %50 = arith.mulf %48, %49 : vector<16x1xf32>
    %51 = arith.mulf %42, %42 : vector<16x64xf32>
    %cst_18 = arith.constant dense<0.000000e+00> : vector<16xf32>
    %52 = vector.multi_reduction <add>, %51, %cst_18 [1] : vector<16x64xf32> to vector<16xf32>
    %53 = vector.shape_cast %52 : vector<16xf32> to vector<16x1xf32>
    %cst_19 = arith.constant 1.562500e-02 : f32
    %54 = vector.broadcast %cst_19 : f32 to vector<16x1xf32>
    %55 = arith.mulf %53, %54 : vector<16x1xf32>
    %56 = arith.mulf %50, %50 : vector<16x1xf32>
    %57 = arith.subf %55, %56 : vector<16x1xf32>
    %58 = vector.broadcast %50 : vector<16x1xf32> to vector<16x64xf32>
    %59 = arith.subf %42, %58 : vector<16x64xf32>
    %cst_20 = arith.constant 9.99999974E-6 : f32
    %60 = vector.broadcast %cst_20 : f32 to vector<16x1xf32>
    %61 = arith.addf %57, %60 : vector<16x1xf32>
    %62 = math.rsqrt %61 : vector<16x1xf32>
    %63 = vector.broadcast %62 : vector<16x1xf32> to vector<16x64xf32>
    %64 = arith.mulf %59, %63 : vector<16x64xf32>
    %65 = vector.shape_cast %44 : vector<64xf32> to vector<1x64xf32>
    %66 = vector.broadcast %65 : vector<1x64xf32> to vector<16x64xf32>
    %67 = arith.mulf %64, %66 : vector<16x64xf32>
    %68 = vector.shape_cast %46 : vector<64xf32> to vector<1x64xf32>
    %69 = vector.broadcast %68 : vector<1x64xf32> to vector<16x64xf32>
    %70 = arith.addf %67, %69 : vector<16x64xf32>
    %c1_21 = arith.constant 1 : index
    %c0_22 = arith.constant 0 : index
    %c0_23 = arith.constant 0 : index
    %71 = vector.load %arg2[%c1_21, %c0_22, %c0_23] : memref<8x64x64xbf16, #tpu.memory_space<vmem>>, vector<1x64x64xbf16>
    %72 = vector.shape_cast %71 : vector<1x64x64xbf16> to vector<64x64xbf16>
    %73 = arith.truncf %70 : vector<16x64xf32> to vector<16x64xbf16>
    %cst_24 = arith.constant dense<0.000000e+00> : vector<16x64xf32>
    %74 = tpu.matmul %73, %72, %cst_24 {dimension_numbers = #tpu.dot_dimension_numbers<[1], [0], [0], [1], [0, 0, 1, 1], [], []>} : vector<16x64xbf16>, vector<64x64xbf16>, vector<16x64xf32> -> vector<16x64xf32>
    %c5 = arith.constant 5 : index
    %c0_25 = arith.constant 0 : index
    %75 = vector.load %arg3[%c5, %c0_25] : memref<24x64xf32, #tpu.memory_space<vmem>>, vector<1x64xf32>
    %76 = vector.shape_cast %75 : vector<1x64xf32> to vector<64xf32>
    %77 = vector.shape_cast %76 : vector<64xf32> to vector<1x64xf32>
    %78 = vector.broadcast %77 : vector<1x64xf32> to vector<16x64xf32>
    %79 = arith.addf %74, %78 : vector<16x64xf32>
    %80 = arith.negf %79 : vector<16x64xf32>
    %81 = math.exp %80 : vector<16x64xf32>
    %cst_26 = arith.constant 1.000000e+00 : f32
    %82 = vector.broadcast %cst_26 : f32 to vector<16x64xf32>
    %83 = arith.addf %82, %81 : vector<16x64xf32>
    %84 = arith.divf %82, %83 : vector<16x64xf32>
    %85 = arith.mulf %79, %84 : vector<16x64xf32>
    %c6 = arith.constant 6 : index
    %c0_27 = arith.constant 0 : index
    %86 = vector.load %arg3[%c6, %c0_27] : memref<24x64xf32, #tpu.memory_space<vmem>>, vector<1x64xf32>
    %87 = vector.shape_cast %86 : vector<1x64xf32> to vector<64xf32>
    %c7 = arith.constant 7 : index
    %c0_28 = arith.constant 0 : index
    %88 = vector.load %arg3[%c7, %c0_28] : memref<24x64xf32, #tpu.memory_space<vmem>>, vector<1x64xf32>
    %89 = vector.shape_cast %88 : vector<1x64xf32> to vector<64xf32>
    %cst_29 = arith.constant dense<0.000000e+00> : vector<16xf32>
    %90 = vector.multi_reduction <add>, %85, %cst_29 [1] : vector<16x64xf32> to vector<16xf32>
    %91 = vector.shape_cast %90 : vector<16xf32> to vector<16x1xf32>
    %cst_30 = arith.constant 1.562500e-02 : f32
    %92 = vector.broadcast %cst_30 : f32 to vector<16x1xf32>
    %93 = arith.mulf %91, %92 : vector<16x1xf32>
    %94 = arith.mulf %85, %85 : vector<16x64xf32>
    %cst_31 = arith.constant dense<0.000000e+00> : vector<16xf32>
    %95 = vector.multi_reduction <add>, %94, %cst_31 [1] : vector<16x64xf32> to vector<16xf32>
    %96 = vector.shape_cast %95 : vector<16xf32> to vector<16x1xf32>
    %cst_32 = arith.constant 1.562500e-02 : f32
    %97 = vector.broadcast %cst_32 : f32 to vector<16x1xf32>
    %98 = arith.mulf %96, %97 : vector<16x1xf32>
    %99 = arith.mulf %93, %93 : vector<16x1xf32>
    %100 = arith.subf %98, %99 : vector<16x1xf32>
    %101 = vector.broadcast %93 : vector<16x1xf32> to vector<16x64xf32>
    %102 = arith.subf %85, %101 : vector<16x64xf32>
    %cst_33 = arith.constant 9.99999974E-6 : f32
    %103 = vector.broadcast %cst_33 : f32 to vector<16x1xf32>
    %104 = arith.addf %100, %103 : vector<16x1xf32>
    %105 = math.rsqrt %104 : vector<16x1xf32>
    %106 = vector.broadcast %105 : vector<16x1xf32> to vector<16x64xf32>
    %107 = arith.mulf %102, %106 : vector<16x64xf32>
    %108 = vector.shape_cast %87 : vector<64xf32> to vector<1x64xf32>
    %109 = vector.broadcast %108 : vector<1x64xf32> to vector<16x64xf32>
    %110 = arith.mulf %107, %109 : vector<16x64xf32>
    %111 = vector.shape_cast %89 : vector<64xf32> to vector<1x64xf32>
    %112 = vector.broadcast %111 : vector<1x64xf32> to vector<16x64xf32>
    %113 = arith.addf %110, %112 : vector<16x64xf32>
    %c2_34 = arith.constant 2 : index
    %c0_35 = arith.constant 0 : index
    %c0_36 = arith.constant 0 : index
    %114 = vector.load %arg2[%c2_34, %c0_35, %c0_36] : memref<8x64x64xbf16, #tpu.memory_space<vmem>>, vector<1x64x64xbf16>
    %115 = vector.shape_cast %114 : vector<1x64x64xbf16> to vector<64x64xbf16>
    %116 = arith.truncf %113 : vector<16x64xf32> to vector<16x64xbf16>
    %cst_37 = arith.constant dense<0.000000e+00> : vector<16x64xf32>
    %117 = tpu.matmul %116, %115, %cst_37 {dimension_numbers = #tpu.dot_dimension_numbers<[1], [0], [0], [1], [0, 0, 1, 1], [], []>} : vector<16x64xbf16>, vector<64x64xbf16>, vector<16x64xf32> -> vector<16x64xf32>
    %c8 = arith.constant 8 : index
    %c0_38 = arith.constant 0 : index
    %118 = vector.load %arg3[%c8, %c0_38] : memref<24x64xf32, #tpu.memory_space<vmem>>, vector<1x64xf32>
    %119 = vector.shape_cast %118 : vector<1x64xf32> to vector<64xf32>
    %120 = vector.shape_cast %119 : vector<64xf32> to vector<1x64xf32>
    %121 = vector.broadcast %120 : vector<1x64xf32> to vector<16x64xf32>
    %122 = arith.addf %117, %121 : vector<16x64xf32>
    %123 = arith.addf %122, %42 : vector<16x64xf32>
    %c9 = arith.constant 9 : index
    %c0_39 = arith.constant 0 : index
    %124 = vector.load %arg3[%c9, %c0_39] : memref<24x64xf32, #tpu.memory_space<vmem>>, vector<1x64xf32>
    %125 = vector.shape_cast %124 : vector<1x64xf32> to vector<64xf32>
    %c10 = arith.constant 10 : index
    %c0_40 = arith.constant 0 : index
    %126 = vector.load %arg3[%c10, %c0_40] : memref<24x64xf32, #tpu.memory_space<vmem>>, vector<1x64xf32>
    %127 = vector.shape_cast %126 : vector<1x64xf32> to vector<64xf32>
    %cst_41 = arith.constant dense<0.000000e+00> : vector<16xf32>
    %128 = vector.multi_reduction <add>, %123, %cst_41 [1] : vector<16x64xf32> to vector<16xf32>
    %129 = vector.shape_cast %128 : vector<16xf32> to vector<16x1xf32>
    %cst_42 = arith.constant 1.562500e-02 : f32
    %130 = vector.broadcast %cst_42 : f32 to vector<16x1xf32>
    %131 = arith.mulf %129, %130 : vector<16x1xf32>
    %132 = arith.mulf %123, %123 : vector<16x64xf32>
    %cst_43 = arith.constant dense<0.000000e+00> : vector<16xf32>
    %133 = vector.multi_reduction <add>, %132, %cst_43 [1] : vector<16x64xf32> to vector<16xf32>
    %134 = vector.shape_cast %133 : vector<16xf32> to vector<16x1xf32>
    %cst_44 = arith.constant 1.562500e-02 : f32
    %135 = vector.broadcast %cst_44 : f32 to vector<16x1xf32>
    %136 = arith.mulf %134, %135 : vector<16x1xf32>
    %137 = arith.mulf %131, %131 : vector<16x1xf32>
    %138 = arith.subf %136, %137 : vector<16x1xf32>
    %139 = vector.broadcast %131 : vector<16x1xf32> to vector<16x64xf32>
    %140 = arith.subf %123, %139 : vector<16x64xf32>
    %cst_45 = arith.constant 9.99999974E-6 : f32
    %141 = vector.broadcast %cst_45 : f32 to vector<16x1xf32>
    %142 = arith.addf %138, %141 : vector<16x1xf32>
    %143 = math.rsqrt %142 : vector<16x1xf32>
    %144 = vector.broadcast %143 : vector<16x1xf32> to vector<16x64xf32>
    %145 = arith.mulf %140, %144 : vector<16x64xf32>
    %146 = vector.shape_cast %125 : vector<64xf32> to vector<1x64xf32>
    %147 = vector.broadcast %146 : vector<1x64xf32> to vector<16x64xf32>
    %148 = arith.mulf %145, %147 : vector<16x64xf32>
    %149 = vector.shape_cast %127 : vector<64xf32> to vector<1x64xf32>
    %150 = vector.broadcast %149 : vector<1x64xf32> to vector<16x64xf32>
    %151 = arith.addf %148, %150 : vector<16x64xf32>
    %c3_46 = arith.constant 3 : index
    %c0_47 = arith.constant 0 : index
    %c0_48 = arith.constant 0 : index
    %152 = vector.load %arg2[%c3_46, %c0_47, %c0_48] : memref<8x64x64xbf16, #tpu.memory_space<vmem>>, vector<1x64x64xbf16>
    %153 = vector.shape_cast %152 : vector<1x64x64xbf16> to vector<64x64xbf16>
    %154 = arith.truncf %151 : vector<16x64xf32> to vector<16x64xbf16>
    %cst_49 = arith.constant dense<0.000000e+00> : vector<16x64xf32>
    %155 = tpu.matmul %154, %153, %cst_49 {dimension_numbers = #tpu.dot_dimension_numbers<[1], [0], [0], [1], [0, 0, 1, 1], [], []>} : vector<16x64xbf16>, vector<64x64xbf16>, vector<16x64xf32> -> vector<16x64xf32>
    %c11 = arith.constant 11 : index
    %c0_50 = arith.constant 0 : index
    %156 = vector.load %arg3[%c11, %c0_50] : memref<24x64xf32, #tpu.memory_space<vmem>>, vector<1x64xf32>
    %157 = vector.shape_cast %156 : vector<1x64xf32> to vector<64xf32>
    %158 = vector.shape_cast %157 : vector<64xf32> to vector<1x64xf32>
    %159 = vector.broadcast %158 : vector<1x64xf32> to vector<16x64xf32>
    %160 = arith.addf %155, %159 : vector<16x64xf32>
    %161 = arith.negf %160 : vector<16x64xf32>
    %162 = math.exp %161 : vector<16x64xf32>
    %cst_51 = arith.constant 1.000000e+00 : f32
    %163 = vector.broadcast %cst_51 : f32 to vector<16x64xf32>
    %164 = arith.addf %163, %162 : vector<16x64xf32>
    %165 = arith.divf %163, %164 : vector<16x64xf32>
    %166 = arith.mulf %160, %165 : vector<16x64xf32>
    %c12 = arith.constant 12 : index
    %c0_52 = arith.constant 0 : index
    %167 = vector.load %arg3[%c12, %c0_52] : memref<24x64xf32, #tpu.memory_space<vmem>>, vector<1x64xf32>
    %168 = vector.shape_cast %167 : vector<1x64xf32> to vector<64xf32>
    %c13 = arith.constant 13 : index
    %c0_53 = arith.constant 0 : index
    %169 = vector.load %arg3[%c13, %c0_53] : memref<24x64xf32, #tpu.memory_space<vmem>>, vector<1x64xf32>
    %170 = vector.shape_cast %169 : vector<1x64xf32> to vector<64xf32>
    %cst_54 = arith.constant dense<0.000000e+00> : vector<16xf32>
    %171 = vector.multi_reduction <add>, %166, %cst_54 [1] : vector<16x64xf32> to vector<16xf32>
    %172 = vector.shape_cast %171 : vector<16xf32> to vector<16x1xf32>
    %cst_55 = arith.constant 1.562500e-02 : f32
    %173 = vector.broadcast %cst_55 : f32 to vector<16x1xf32>
    %174 = arith.mulf %172, %173 : vector<16x1xf32>
    %175 = arith.mulf %166, %166 : vector<16x64xf32>
    %cst_56 = arith.constant dense<0.000000e+00> : vector<16xf32>
    %176 = vector.multi_reduction <add>, %175, %cst_56 [1] : vector<16x64xf32> to vector<16xf32>
    %177 = vector.shape_cast %176 : vector<16xf32> to vector<16x1xf32>
    %cst_57 = arith.constant 1.562500e-02 : f32
    %178 = vector.broadcast %cst_57 : f32 to vector<16x1xf32>
    %179 = arith.mulf %177, %178 : vector<16x1xf32>
    %180 = arith.mulf %174, %174 : vector<16x1xf32>
    %181 = arith.subf %179, %180 : vector<16x1xf32>
    %182 = vector.broadcast %174 : vector<16x1xf32> to vector<16x64xf32>
    %183 = arith.subf %166, %182 : vector<16x64xf32>
    %cst_58 = arith.constant 9.99999974E-6 : f32
    %184 = vector.broadcast %cst_58 : f32 to vector<16x1xf32>
    %185 = arith.addf %181, %184 : vector<16x1xf32>
    %186 = math.rsqrt %185 : vector<16x1xf32>
    %187 = vector.broadcast %186 : vector<16x1xf32> to vector<16x64xf32>
    %188 = arith.mulf %183, %187 : vector<16x64xf32>
    %189 = vector.shape_cast %168 : vector<64xf32> to vector<1x64xf32>
    %190 = vector.broadcast %189 : vector<1x64xf32> to vector<16x64xf32>
    %191 = arith.mulf %188, %190 : vector<16x64xf32>
    %192 = vector.shape_cast %170 : vector<64xf32> to vector<1x64xf32>
    %193 = vector.broadcast %192 : vector<1x64xf32> to vector<16x64xf32>
    %194 = arith.addf %191, %193 : vector<16x64xf32>
    %c4_59 = arith.constant 4 : index
    %c0_60 = arith.constant 0 : index
    %c0_61 = arith.constant 0 : index
    %195 = vector.load %arg2[%c4_59, %c0_60, %c0_61] : memref<8x64x64xbf16, #tpu.memory_space<vmem>>, vector<1x64x64xbf16>
    %196 = vector.shape_cast %195 : vector<1x64x64xbf16> to vector<64x64xbf16>
    %197 = arith.truncf %194 : vector<16x64xf32> to vector<16x64xbf16>
    %cst_62 = arith.constant dense<0.000000e+00> : vector<16x64xf32>
    %198 = tpu.matmul %197, %196, %cst_62 {dimension_numbers = #tpu.dot_dimension_numbers<[1], [0], [0], [1], [0, 0, 1, 1], [], []>} : vector<16x64xbf16>, vector<64x64xbf16>, vector<16x64xf32> -> vector<16x64xf32>
    %c14 = arith.constant 14 : index
    %c0_63 = arith.constant 0 : index
    %199 = vector.load %arg3[%c14, %c0_63] : memref<24x64xf32, #tpu.memory_space<vmem>>, vector<1x64xf32>
    %200 = vector.shape_cast %199 : vector<1x64xf32> to vector<64xf32>
    %201 = vector.shape_cast %200 : vector<64xf32> to vector<1x64xf32>
    %202 = vector.broadcast %201 : vector<1x64xf32> to vector<16x64xf32>
    %203 = arith.addf %198, %202 : vector<16x64xf32>
    %204 = arith.addf %203, %123 : vector<16x64xf32>
    %c15 = arith.constant 15 : index
    %c0_64 = arith.constant 0 : index
    %205 = vector.load %arg3[%c15, %c0_64] : memref<24x64xf32, #tpu.memory_space<vmem>>, vector<1x64xf32>
    %206 = vector.shape_cast %205 : vector<1x64xf32> to vector<64xf32>
    %c16 = arith.constant 16 : index
    %c0_65 = arith.constant 0 : index
    %207 = vector.load %arg3[%c16, %c0_65] : memref<24x64xf32, #tpu.memory_space<vmem>>, vector<1x64xf32>
    %208 = vector.shape_cast %207 : vector<1x64xf32> to vector<64xf32>
    %cst_66 = arith.constant dense<0.000000e+00> : vector<16xf32>
    %209 = vector.multi_reduction <add>, %204, %cst_66 [1] : vector<16x64xf32> to vector<16xf32>
    %210 = vector.shape_cast %209 : vector<16xf32> to vector<16x1xf32>
    %cst_67 = arith.constant 1.562500e-02 : f32
    %211 = vector.broadcast %cst_67 : f32 to vector<16x1xf32>
    %212 = arith.mulf %210, %211 : vector<16x1xf32>
    %213 = arith.mulf %204, %204 : vector<16x64xf32>
    %cst_68 = arith.constant dense<0.000000e+00> : vector<16xf32>
    %214 = vector.multi_reduction <add>, %213, %cst_68 [1] : vector<16x64xf32> to vector<16xf32>
    %215 = vector.shape_cast %214 : vector<16xf32> to vector<16x1xf32>
    %cst_69 = arith.constant 1.562500e-02 : f32
    %216 = vector.broadcast %cst_69 : f32 to vector<16x1xf32>
    %217 = arith.mulf %215, %216 : vector<16x1xf32>
    %218 = arith.mulf %212, %212 : vector<16x1xf32>
    %219 = arith.subf %217, %218 : vector<16x1xf32>
    %220 = vector.broadcast %212 : vector<16x1xf32> to vector<16x64xf32>
    %221 = arith.subf %204, %220 : vector<16x64xf32>
    %cst_70 = arith.constant 9.99999974E-6 : f32
    %222 = vector.broadcast %cst_70 : f32 to vector<16x1xf32>
    %223 = arith.addf %219, %222 : vector<16x1xf32>
    %224 = math.rsqrt %223 : vector<16x1xf32>
    %225 = vector.broadcast %224 : vector<16x1xf32> to vector<16x64xf32>
    %226 = arith.mulf %221, %225 : vector<16x64xf32>
    %227 = vector.shape_cast %206 : vector<64xf32> to vector<1x64xf32>
    %228 = vector.broadcast %227 : vector<1x64xf32> to vector<16x64xf32>
    %229 = arith.mulf %226, %228 : vector<16x64xf32>
    %230 = vector.shape_cast %208 : vector<64xf32> to vector<1x64xf32>
    %231 = vector.broadcast %230 : vector<1x64xf32> to vector<16x64xf32>
    %232 = arith.addf %229, %231 : vector<16x64xf32>
    %c5_71 = arith.constant 5 : index
    %c0_72 = arith.constant 0 : index
    %c0_73 = arith.constant 0 : index
    %233 = vector.load %arg2[%c5_71, %c0_72, %c0_73] : memref<8x64x64xbf16, #tpu.memory_space<vmem>>, vector<1x64x64xbf16>
    %234 = vector.shape_cast %233 : vector<1x64x64xbf16> to vector<64x64xbf16>
    %235 = arith.truncf %232 : vector<16x64xf32> to vector<16x64xbf16>
    %cst_74 = arith.constant dense<0.000000e+00> : vector<16x64xf32>
    %236 = tpu.matmul %235, %234, %cst_74 {dimension_numbers = #tpu.dot_dimension_numbers<[1], [0], [0], [1], [0, 0, 1, 1], [], []>} : vector<16x64xbf16>, vector<64x64xbf16>, vector<16x64xf32> -> vector<16x64xf32>
    %c17 = arith.constant 17 : index
    %c0_75 = arith.constant 0 : index
    %237 = vector.load %arg3[%c17, %c0_75] : memref<24x64xf32, #tpu.memory_space<vmem>>, vector<1x64xf32>
    %238 = vector.shape_cast %237 : vector<1x64xf32> to vector<64xf32>
    %239 = vector.shape_cast %238 : vector<64xf32> to vector<1x64xf32>
    %240 = vector.broadcast %239 : vector<1x64xf32> to vector<16x64xf32>
    %241 = arith.addf %236, %240 : vector<16x64xf32>
    %242 = arith.negf %241 : vector<16x64xf32>
    %243 = math.exp %242 : vector<16x64xf32>
    %cst_76 = arith.constant 1.000000e+00 : f32
    %244 = vector.broadcast %cst_76 : f32 to vector<16x64xf32>
    %245 = arith.addf %244, %243 : vector<16x64xf32>
    %246 = arith.divf %244, %245 : vector<16x64xf32>
    %247 = arith.mulf %241, %246 : vector<16x64xf32>
    %c18 = arith.constant 18 : index
    %c0_77 = arith.constant 0 : index
    %248 = vector.load %arg3[%c18, %c0_77] : memref<24x64xf32, #tpu.memory_space<vmem>>, vector<1x64xf32>
    %249 = vector.shape_cast %248 : vector<1x64xf32> to vector<64xf32>
    %c19 = arith.constant 19 : index
    %c0_78 = arith.constant 0 : index
    %250 = vector.load %arg3[%c19, %c0_78] : memref<24x64xf32, #tpu.memory_space<vmem>>, vector<1x64xf32>
    %251 = vector.shape_cast %250 : vector<1x64xf32> to vector<64xf32>
    %cst_79 = arith.constant dense<0.000000e+00> : vector<16xf32>
    %252 = vector.multi_reduction <add>, %247, %cst_79 [1] : vector<16x64xf32> to vector<16xf32>
    %253 = vector.shape_cast %252 : vector<16xf32> to vector<16x1xf32>
    %cst_80 = arith.constant 1.562500e-02 : f32
    %254 = vector.broadcast %cst_80 : f32 to vector<16x1xf32>
    %255 = arith.mulf %253, %254 : vector<16x1xf32>
    %256 = arith.mulf %247, %247 : vector<16x64xf32>
    %cst_81 = arith.constant dense<0.000000e+00> : vector<16xf32>
    %257 = vector.multi_reduction <add>, %256, %cst_81 [1] : vector<16x64xf32> to vector<16xf32>
    %258 = vector.shape_cast %257 : vector<16xf32> to vector<16x1xf32>
    %cst_82 = arith.constant 1.562500e-02 : f32
    %259 = vector.broadcast %cst_82 : f32 to vector<16x1xf32>
    %260 = arith.mulf %258, %259 : vector<16x1xf32>
    %261 = arith.mulf %255, %255 : vector<16x1xf32>
    %262 = arith.subf %260, %261 : vector<16x1xf32>
    %263 = vector.broadcast %255 : vector<16x1xf32> to vector<16x64xf32>
    %264 = arith.subf %247, %263 : vector<16x64xf32>
    %cst_83 = arith.constant 9.99999974E-6 : f32
    %265 = vector.broadcast %cst_83 : f32 to vector<16x1xf32>
    %266 = arith.addf %262, %265 : vector<16x1xf32>
    %267 = math.rsqrt %266 : vector<16x1xf32>
    %268 = vector.broadcast %267 : vector<16x1xf32> to vector<16x64xf32>
    %269 = arith.mulf %264, %268 : vector<16x64xf32>
    %270 = vector.shape_cast %249 : vector<64xf32> to vector<1x64xf32>
    %271 = vector.broadcast %270 : vector<1x64xf32> to vector<16x64xf32>
    %272 = arith.mulf %269, %271 : vector<16x64xf32>
    %273 = vector.shape_cast %251 : vector<64xf32> to vector<1x64xf32>
    %274 = vector.broadcast %273 : vector<1x64xf32> to vector<16x64xf32>
    %275 = arith.addf %272, %274 : vector<16x64xf32>
    %c6_84 = arith.constant 6 : index
    %c0_85 = arith.constant 0 : index
    %c0_86 = arith.constant 0 : index
    %276 = vector.load %arg2[%c6_84, %c0_85, %c0_86] : memref<8x64x64xbf16, #tpu.memory_space<vmem>>, vector<1x64x64xbf16>
    %277 = vector.shape_cast %276 : vector<1x64x64xbf16> to vector<64x64xbf16>
    %278 = arith.truncf %275 : vector<16x64xf32> to vector<16x64xbf16>
    %cst_87 = arith.constant dense<0.000000e+00> : vector<16x64xf32>
    %279 = tpu.matmul %278, %277, %cst_87 {dimension_numbers = #tpu.dot_dimension_numbers<[1], [0], [0], [1], [0, 0, 1, 1], [], []>} : vector<16x64xbf16>, vector<64x64xbf16>, vector<16x64xf32> -> vector<16x64xf32>
    %c20 = arith.constant 20 : index
    %c0_88 = arith.constant 0 : index
    %280 = vector.load %arg3[%c20, %c0_88] : memref<24x64xf32, #tpu.memory_space<vmem>>, vector<1x64xf32>
    %281 = vector.shape_cast %280 : vector<1x64xf32> to vector<64xf32>
    %282 = vector.shape_cast %281 : vector<64xf32> to vector<1x64xf32>
    %283 = vector.broadcast %282 : vector<1x64xf32> to vector<16x64xf32>
    %284 = arith.addf %279, %283 : vector<16x64xf32>
    %285 = arith.addf %284, %204 : vector<16x64xf32>
    %c7_89 = arith.constant 7 : index
    %c0_90 = arith.constant 0 : index
    %c0_91 = arith.constant 0 : index
    %286 = vector.load %arg2[%c7_89, %c0_90, %c0_91] : memref<8x64x64xbf16, #tpu.memory_space<vmem>>, vector<1x64x64xbf16>
    %287 = vector.shape_cast %286 : vector<1x64x64xbf16> to vector<64x64xbf16>
    %288 = arith.truncf %285 : vector<16x64xf32> to vector<16x64xbf16>
    %cst_92 = arith.constant dense<0.000000e+00> : vector<16x64xf32>
    %289 = tpu.matmul %288, %287, %cst_92 {dimension_numbers = #tpu.dot_dimension_numbers<[1], [0], [0], [1], [0, 0, 1, 1], [], []>} : vector<16x64xbf16>, vector<64x64xbf16>, vector<16x64xf32> -> vector<16x64xf32>
    %c21 = arith.constant 21 : index
    %c0_93 = arith.constant 0 : index
    %290 = vector.load %arg3[%c21, %c0_93] : memref<24x64xf32, #tpu.memory_space<vmem>>, vector<1x64xf32>
    %291 = vector.shape_cast %290 : vector<1x64xf32> to vector<64xf32>
    %292 = vector.shape_cast %291 : vector<64xf32> to vector<1x64xf32>
    %293 = vector.broadcast %292 : vector<1x64xf32> to vector<16x64xf32>
    %294 = arith.addf %289, %293 : vector<16x64xf32>
    %c22 = arith.constant 22 : index
    %c0_94 = arith.constant 0 : index
    %295 = vector.load %arg3[%c22, %c0_94] : memref<24x64xf32, #tpu.memory_space<vmem>>, vector<1x64xf32>
    %296 = vector.shape_cast %295 : vector<1x64xf32> to vector<64xf32>
    %c23 = arith.constant 23 : index
    %c0_95 = arith.constant 0 : index
    %297 = vector.load %arg3[%c23, %c0_95] : memref<24x64xf32, #tpu.memory_space<vmem>>, vector<1x64xf32>
    %298 = vector.shape_cast %297 : vector<1x64xf32> to vector<64xf32>
    %cst_96 = arith.constant dense<0.000000e+00> : vector<16xf32>
    %299 = vector.multi_reduction <add>, %294, %cst_96 [1] : vector<16x64xf32> to vector<16xf32>
    %300 = vector.shape_cast %299 : vector<16xf32> to vector<16x1xf32>
    %cst_97 = arith.constant 1.562500e-02 : f32
    %301 = vector.broadcast %cst_97 : f32 to vector<16x1xf32>
    %302 = arith.mulf %300, %301 : vector<16x1xf32>
    %303 = arith.mulf %294, %294 : vector<16x64xf32>
    %cst_98 = arith.constant dense<0.000000e+00> : vector<16xf32>
    %304 = vector.multi_reduction <add>, %303, %cst_98 [1] : vector<16x64xf32> to vector<16xf32>
    %305 = vector.shape_cast %304 : vector<16xf32> to vector<16x1xf32>
    %cst_99 = arith.constant 1.562500e-02 : f32
    %306 = vector.broadcast %cst_99 : f32 to vector<16x1xf32>
    %307 = arith.mulf %305, %306 : vector<16x1xf32>
    %308 = arith.mulf %302, %302 : vector<16x1xf32>
    %309 = arith.subf %307, %308 : vector<16x1xf32>
    %310 = vector.broadcast %302 : vector<16x1xf32> to vector<16x64xf32>
    %311 = arith.subf %294, %310 : vector<16x64xf32>
    %cst_100 = arith.constant 9.99999974E-6 : f32
    %312 = vector.broadcast %cst_100 : f32 to vector<16x1xf32>
    %313 = arith.addf %309, %312 : vector<16x1xf32>
    %314 = math.rsqrt %313 : vector<16x1xf32>
    %315 = vector.broadcast %314 : vector<16x1xf32> to vector<16x64xf32>
    %316 = arith.mulf %311, %315 : vector<16x64xf32>
    %317 = vector.shape_cast %296 : vector<64xf32> to vector<1x64xf32>
    %318 = vector.broadcast %317 : vector<1x64xf32> to vector<16x64xf32>
    %319 = arith.mulf %316, %318 : vector<16x64xf32>
    %320 = vector.shape_cast %298 : vector<64xf32> to vector<1x64xf32>
    %321 = vector.broadcast %320 : vector<1x64xf32> to vector<16x64xf32>
    %322 = arith.addf %319, %321 : vector<16x64xf32>
    %323 = arith.negf %322 : vector<16x64xf32>
    %324 = math.exp %323 : vector<16x64xf32>
    %cst_101 = arith.constant 1.000000e+00 : f32
    %325 = vector.broadcast %cst_101 : f32 to vector<16x64xf32>
    %326 = arith.addf %325, %324 : vector<16x64xf32>
    %327 = arith.divf %325, %326 : vector<16x64xf32>
    %328 = arith.mulf %322, %327 : vector<16x64xf32>
    %c0_102 = arith.constant 0 : index
    %c0_103 = arith.constant 0 : index
    %329 = vector.load %arg4[%c0_102, %c0_103] : memref<64x128xbf16, #tpu.memory_space<vmem>>, vector<64x128xbf16>
    %330 = arith.truncf %328 : vector<16x64xf32> to vector<16x64xbf16>
    %cst_104 = arith.constant dense<0.000000e+00> : vector<16x128xf32>
    %331 = tpu.matmul %330, %329, %cst_104 {dimension_numbers = #tpu.dot_dimension_numbers<[1], [0], [0], [1], [0, 0, 1, 1], [], []>} : vector<16x64xbf16>, vector<64x128xbf16>, vector<16x128xf32> -> vector<16x128xf32>
    %c0_105 = arith.constant 0 : index
    %c0_106 = arith.constant 0 : index
    %332 = vector.load %arg5[%c0_105, %c0_106] : memref<3x128xf32, #tpu.memory_space<vmem>>, vector<1x128xf32>
    %333 = vector.shape_cast %332 : vector<1x128xf32> to vector<128xf32>
    %334 = vector.shape_cast %333 : vector<128xf32> to vector<1x128xf32>
    %335 = vector.broadcast %334 : vector<1x128xf32> to vector<16x128xf32>
    %336 = arith.addf %331, %335 : vector<16x128xf32>
    %c1_107 = arith.constant 1 : index
    %c0_108 = arith.constant 0 : index
    %337 = vector.load %arg5[%c1_107, %c0_108] : memref<3x128xf32, #tpu.memory_space<vmem>>, vector<1x128xf32>
    %338 = vector.shape_cast %337 : vector<1x128xf32> to vector<128xf32>
    %c2_109 = arith.constant 2 : index
    %c0_110 = arith.constant 0 : index
    %339 = vector.load %arg5[%c2_109, %c0_110] : memref<3x128xf32, #tpu.memory_space<vmem>>, vector<1x128xf32>
    %340 = vector.shape_cast %339 : vector<1x128xf32> to vector<128xf32>
    %cst_111 = arith.constant dense<0.000000e+00> : vector<16xf32>
    %341 = vector.multi_reduction <add>, %336, %cst_111 [1] : vector<16x128xf32> to vector<16xf32>
    %342 = vector.shape_cast %341 : vector<16xf32> to vector<16x1xf32>
    %cst_112 = arith.constant 3.125000e-02 : f32
    %343 = vector.broadcast %cst_112 : f32 to vector<16x1xf32>
    %344 = arith.mulf %342, %343 : vector<16x1xf32>
    %345 = arith.mulf %336, %336 : vector<16x128xf32>
    %cst_113 = arith.constant dense<0.000000e+00> : vector<16xf32>
    %346 = vector.multi_reduction <add>, %345, %cst_113 [1] : vector<16x128xf32> to vector<16xf32>
    %347 = vector.shape_cast %346 : vector<16xf32> to vector<16x1xf32>
    %cst_114 = arith.constant 3.125000e-02 : f32
    %348 = vector.broadcast %cst_114 : f32 to vector<16x1xf32>
    %349 = arith.mulf %347, %348 : vector<16x1xf32>
    %350 = arith.mulf %344, %344 : vector<16x1xf32>
    %351 = arith.subf %349, %350 : vector<16x1xf32>
    %352 = vector.broadcast %344 : vector<16x1xf32> to vector<16x128xf32>
    %353 = arith.subf %336, %352 : vector<16x128xf32>
    %cst_115 = arith.constant 9.99999974E-6 : f32
    %354 = vector.broadcast %cst_115 : f32 to vector<16x1xf32>
    %355 = arith.addf %351, %354 : vector<16x1xf32>
    %356 = math.rsqrt %355 : vector<16x1xf32>
    %357 = vector.broadcast %356 : vector<16x1xf32> to vector<16x128xf32>
    %358 = arith.mulf %353, %357 : vector<16x128xf32>
    %359 = vector.shape_cast %338 : vector<128xf32> to vector<1x128xf32>
    %360 = vector.broadcast %359 : vector<1x128xf32> to vector<16x128xf32>
    %361 = arith.mulf %358, %360 : vector<16x128xf32>
    %362 = vector.shape_cast %340 : vector<128xf32> to vector<1x128xf32>
    %363 = vector.broadcast %362 : vector<1x128xf32> to vector<16x128xf32>
    %364 = arith.addf %361, %363 : vector<16x128xf32>
    %c0_116 = arith.constant 0 : index
    %c0_117 = arith.constant 0 : index
    %365 = vector.load %arg6[%c0_116, %c0_117] : memref<16x128xf32, #tpu.memory_space<vmem>>, vector<16x128xf32>
    tpu.vector_store %arg6[%c0_116, %c0_117], %364 {strides = array<i32>} : memref<16x128xf32, #tpu.memory_space<vmem>>, vector<16x128xf32>,
    return
  }
  func.func @transform_0(%arg0: i32) -> (i32, i32) {
    %c0_i32 = arith.constant 0 : i32
    %c0_i32_0 = arith.constant 0 : i32
    return %arg0, %c0_i32 : i32, i32
  }
  func.func @transform_1(%arg0: i32) -> (i32, i32, i32) {
    %c0_i32 = arith.constant 0 : i32
    %c0_i32_0 = arith.constant 0 : i32
    %c0_i32_1 = arith.constant 0 : i32
    %c0_i32_2 = arith.constant 0 : i32
    return %c0_i32, %c0_i32_0, %c0_i32_1 : i32, i32, i32
  }
  func.func @transform_2(%arg0: i32) -> (i32, i32) {
    %c0_i32 = arith.constant 0 : i32
    %c0_i32_0 = arith.constant 0 : i32
    %c0_i32_1 = arith.constant 0 : i32
    return %c0_i32, %c0_i32_0 : i32, i32
  }
  func.func @transform_3(%arg0: i32) -> (i32, i32) {
    %c0_i32 = arith.constant 0 : i32
    %c0_i32_0 = arith.constant 0 : i32
    %c0_i32_1 = arith.constant 0 : i32
    return %c0_i32, %c0_i32_0 : i32, i32
  }
  func.func @transform_4(%arg0: i32) -> (i32, i32) {
    %c0_i32 = arith.constant 0 : i32
    %c0_i32_0 = arith.constant 0 : i32
    %c0_i32_1 = arith.constant 0 : i32
    return %c0_i32, %c0_i32_0 : i32, i32
  }
  func.func @transform_5(%arg0: i32) -> (i32, i32) {
    %c0_i32 = arith.constant 0 : i32
    %c0_i32_0 = arith.constant 0 : i32
    return %arg0, %c0_i32 : i32, i32
  }
}

</mosaic_0001>

<llo_original>
// kernel: aicube_translate.1
$region0: #{aicube_translate.1}
  #allocation0 [shape = 'u32[]', space=smem, size = 0x4, offset = 0x4, fixed_abs, tag = 'smem constant byte address 0x4 - core index']
  #allocation1 [shape = 'u32[144,128]{1,0:T(1,128)}', space=vmem, size = 0x12000, scoped, tag = 'internal scratch']
  %s0 = inlined_call_operand.vmem [shape: bf16[16,64], index: 0, kind: input, shape index: {}]
  %s1 = inlined_call_operand.hbm [shape: bf16[8,64,64], index: 1, kind: input, shape index: {}]
  %s2 = inlined_call_operand.hbm [shape: f32[24,64], index: 2, kind: input, shape index: {}]
  %s3 = inlined_call_operand.vmem [shape: bf16[64,128], index: 3, kind: input, shape index: {}]
  %s4 = inlined_call_operand.vmem [shape: f32[3,128], index: 4, kind: input, shape index: {}]
  %s5 = inlined_call_operand.hbm [shape: f32[16,128], index: 5, kind: output, shape index: {}]
  %s6 = sld [smem:[#allocation0]]
  $region38: #{aicube_translate.1} parent=0
    _
  %s8 = ssub.s32 1, %s6
  %s9 = scalar_select 0, %s8, %s6
  $region1: #{aicube_translate.1} parent=0
    #allocation2 [shape = 'u8[131072]{0}', space=vmem, size = 0x20000, scoped, tag = 'input window, operand 1, single buffered']
    #allocation3 [shape = 's32[1]{0}', space=sflag, size = 0x4, scoped, tag = 'scoped memory for aicube_translate.1']
    #allocation4 [shape = 's32[1]{0}', space=sflag, size = 0x4, scoped, tag = 'scoped memory for aicube_translate.1']
    #allocation5 [shape = 'u8[12288]{0}', space=vmem, size = 0x3000, scoped, tag = 'input window, operand 2, single buffered']
    #allocation6 [shape = 's32[1]{0}', space=sflag, size = 0x4, scoped, tag = 'scoped memory for aicube_translate.1']
    #allocation7 [shape = 'u8[8192]{0}', space=vmem, size = 0x2000, scoped, tag = 'output window, operand 0, single buffered']
    %10 = vsyncpa [#allocation3], 0
    %11 = vsyncpa [#allocation6], 0
    %12 = vsyncpa [#allocation4], 0
    // Predicated region
    $region2: #{aicube_translate.1} parent=1 // pred_check
      _
    $region3: #{aicube_translate.1} parent=1 // pred_check_branch
      %14 = sbr.rel (0) target = $region5
    $region4: #{aicube_translate.1} parent=1 // pred_region
      _
    $region5: #{aicube_translate.1} parent=1 // pred_fallthru
      _
    // Predicated region
    $region6: #{aicube_translate.1} parent=1 // pred_check
      _
    $region7: #{aicube_translate.1} parent=1 // pred_check_branch
      %16 = sbr.rel (0) target = $region9
    $region8: #{aicube_translate.1} parent=1 // pred_region
      %s18 = ssub.s32 4096, 4096
      %19 = vsyncadd [#allocation3], %s18
      %s20 = sshll.u32 [#allocation2], 4
      %s21 = int_to_ptr.vmem [resolvable:$true] %s20
      %26 = dma.hbm_to_vmem [thread:$0]  %s1, 4096, %s21, [#allocation3], 64, 64, 4
    $region9: #{aicube_translate.1} parent=1 // pred_fallthru
      _
    // Predicated region
    $region10: #{aicube_translate.1} parent=1 // pred_check
      _
    $region11: #{aicube_translate.1} parent=1 // pred_check_branch
      %28 = sbr.rel (0) target = $region13
    $region12: #{aicube_translate.1} parent=1 // pred_region
      %s30 = ssub.s32 384, 384
      %31 = vsyncadd [#allocation6], %s30
      %s32 = sshll.u32 [#allocation5], 4
      %s33 = int_to_ptr.vmem [resolvable:$true] %s32
      %38 = dma.hbm_to_vmem [thread:$0]  %s2, 384, %s33, [#allocation6], 128, 128, 8
    $region13: #{aicube_translate.1} parent=1 // pred_fallthru
      _
    // Predicated region
    $region14: #{aicube_translate.1} parent=1 // pred_check
      _
    $region15: #{aicube_translate.1} parent=1 // pred_check_branch
      %40 = sbr.rel (0) target = $region17
    $region16: #{aicube_translate.1} parent=1 // pred_region
      _
    $region17: #{aicube_translate.1} parent=1 // pred_fallthru
      _
    // Predicated region
    $region18: #{aicube_translate.1} parent=1 // pred_check
      _
    $region19: #{aicube_translate.1} parent=1 // pred_check_branch
      %42 = sbr.rel (0) target = $region21
    $region20: #{aicube_translate.1} parent=1 // pred_region
      _
    $region21: #{aicube_translate.1} parent=1 // pred_fallthru
      _
    // Predicated region
    $region22: #{aicube_translate.1} parent=1 // pred_check
      _
    $region23: #{aicube_translate.1} parent=1 // pred_check_branch
      %44 = sbr.rel (0) target = $region25
    $region24: #{aicube_translate.1} parent=1 // pred_region
      %45 = dma.done [#allocation3], 4096
    $region25: #{aicube_translate.1} parent=1 // pred_fallthru
      _
    // Predicated region
    $region26: #{aicube_translate.1} parent=1 // pred_check
      _
    $region27: #{aicube_translate.1} parent=1 // pred_check_branch
      %47 = sbr.rel (0) target = $region29
    $region28: #{aicube_translate.1} parent=1 // pred_region
      %48 = dma.done [#allocation6], 384
    $region29: #{aicube_translate.1} parent=1 // pred_fallthru
      _
    %v50 = vld [vmem:[%s0] sm:$0xf]
    %v51 = vld [vmem:[%s0 + $0x4] sm:$0xf]
    %v52 = vld [vmem:[#allocation2] sm:$0xf]
    %v53 = vld [vmem:[#allocation2 + $0x4] sm:$0xf]
    %v54 = vld [vmem:[#allocation2 + $0x8] sm:$0xf]
    %v55 = vld [vmem:[#allocation2 + $0xc] sm:$0xf]
    %v56 = vld [vmem:[#allocation2 + $0x10] sm:$0xf]
    %v57 = vld [vmem:[#allocation2 + $0x14] sm:$0xf]
    %v58 = vld [vmem:[#allocation2 + $0x18] sm:$0xf]
    %v59 = vld [vmem:[#allocation2 + $0x1c] sm:$0xf]
    %v60 = vld [vmem:[#allocation5] sm:$0x1]
    %v61 = vlaneseq
    %v62 = vshrl.u32 %v61, 7
    %v63 = vsub.s32 0, %v62
    %v64 = vrot.slane %v60, %v63
    %v67 = vunpack.c.l.b16 %v50
    %v68 = vunpack.c.l.b16 %v51
    %v69 = vpack.c.b16 %v68, %v67
    %v78 = vunpack.c.l.b16 %v52
    %v79 = vunpack.c.l.b16 %v53
    %v80 = vunpack.c.l.b16 %v54
    %v81 = vunpack.c.l.b16 %v55
    %v82 = vunpack.c.l.b16 %v56
    %v83 = vunpack.c.l.b16 %v57
    %v84 = vunpack.c.l.b16 %v58
    %v85 = vunpack.c.l.b16 %v59
    %v86 = vpack.c.b16 %v79, %v78
    %v87 = vpack.c.b16 %v81, %v80
    %v88 = vpack.c.b16 %v83, %v82
    %v89 = vpack.c.b16 %v85, %v84
    %vm94 = vcmask 523264
    %v96 = vsel %vm94, %v69, 0
    %98 = vmatprep.subr.bf16.mxu0 0
    %99 = vmatpush1.bf16.msra.mxu0 %v86
    %100 = vmatprep.subr.bf16.mxu0 0
    %101 = vmatpush1.bf16.msra.mxu0 %v87
    %102 = vmatprep.subr.bf16.mxu0 0
    %103 = vmatpush1.bf16.msra.mxu0 %v88
    %104 = vmatprep.subr.bf16.mxu0 0
    %105 = vmatpush1.bf16.msra.mxu0 %v89
    %106 = vmatprep.subr.bf16.mxu0 0
    %107 = vmatpush1.bf16.msra.mxu0 0
    %108 = vmatprep.subr.bf16.mxu0 0
    %109 = vmatpush1.bf16.msra.mxu0 0
    %110 = vmatprep.subr.bf16.mxu0 0
    %111 = vmatpush1.bf16.msra.mxu0 0
    %112 = vmatprep.subr.bf16.mxu0 0
    %113 = vmatpush1.bf16.msra.mxu0 0
    %114 = vmatprep.subr.bf16.mxu0 0
    %115 = vmatpush1.bf16.msra.mxu0 0
    %116 = vmatprep.subr.bf16.mxu0 0
    %117 = vmatpush1.bf16.msra.mxu0 0
    %118 = vmatprep.subr.bf16.mxu0 0
    %119 = vmatpush1.bf16.msra.mxu0 0
    %120 = vmatprep.subr.bf16.mxu0 0
    %121 = vmatpush1.bf16.msra.mxu0 0
    %122 = vmatprep.subr.bf16.mxu0 0
    %123 = vmatpush1.bf16.msra.mxu0 0
    %124 = vmatprep.subr.bf16.mxu0 0
    %125 = vmatpush1.bf16.msra.mxu0 0
    %126 = vmatprep.subr.bf16.mxu0 0
    %127 = vmatpush1.bf16.msra.mxu0 0
    %128 = vmatprep.subr.bf16.mxu0 0
    %129 = vmatpush1.bf16.msra.mxu0 0
    %130 = vmatprep.mubr.bf16.mxu0 0
    %131 = vmatmul.mubr.bf16.gmra.mrb[0].mxu0 %v96
    %v132 = vpop.f32.mrb[0].mxu0
    %v133 = vadd.f32 %v64, %v132
    %v134 = vpop.f32.mrb[0].mxu0
    %v135 = vpop.f32.mrb[0].mxu0
    %v136 = vadd.f32 %v64, %v135
    %v137 = vpop.f32.mrb[0].mxu0
    %138 = vdwg.mxu0
    %v139 = vld [vmem:[#allocation5 + $0x1] sm:$0x1]
    %v140 = vld [vmem:[#allocation5 + $0x2] sm:$0x1]
    %v141 = vsel %vm94, %v133, 0.0
    %142 = vadd.xlane.f32.xlu0 %v141
    %v143 = vpop.xlane.xlu0 %142
    %v144 = vsel %vm94, %v136, 0.0
    %145 = vadd.xlane.f32.xlu0 %v144
    %v146 = vpop.xlane.xlu0 %145
    %v147 = vmul.f32 %v143, 0.015625
    %v148 = vmul.f32 %v146, 0.015625
    %v149 = vmul.f32 %v133, %v133
    %v150 = vmul.f32 %v136, %v136
    %v151 = vsel %vm94, %v149, 0.0
    %152 = vadd.xlane.f32.xlu0 %v151
    %v153 = vpop.xlane.xlu0 %152
    %v154 = vsel %vm94, %v150, 0.0
    %155 = vadd.xlane.f32.xlu0 %v154
    %v156 = vpop.xlane.xlu0 %155
    %v157 = vmul.f32 %v153, 0.015625
    %v158 = vmul.f32 %v156, 0.015625
    %v159 = vmul.f32 %v147, %v147
    %v160 = vmul.f32 %v148, %v148
    %v161 = vsub.f32 %v157, %v159
    %v162 = vsub.f32 %v158, %v160
    %v163 = vsub.f32 %v133, %v147
    %v164 = vsub.f32 %v136, %v148
    %v165 = vadd.f32 %v161, 1e-05
    %v166 = vadd.f32 %v162, 1e-05
    %v167 = vrsqrt.pop %v165
    %v168 = vrsqrt.pop %v166
    %v169 = vmul.f32 %v163, %v167
    %v170 = vmul.f32 %v164, %v168
    %v171 = vlaneseq
    %v172 = vshrl.u32 %v171, 7
    %v173 = vsub.s32 0, %v172
    %v174 = vrot.slane %v139, %v173
    %v175 = vmul.f32 %v169, %v174
    %v176 = vmul.f32 %v170, %v174
    %v177 = vlaneseq
    %v178 = vshrl.u32 %v177, 7
    %v179 = vsub.s32 0, %v178
    %v180 = vrot.slane %v140, %v179
    %v181 = vadd.f32 %v175, %v180
    %v182 = vadd.f32 %v176, %v180
    %v183 = vxor.u32 %v181, 2147483648
    %v184 = vxor.u32 %v182, 2147483648
    %v185 = vmul.f32 %v183, 1.442695
    %v186 = vpow.pop %v185
    %v187 = vmul.f32 %v184, 1.442695
    %v188 = vpow.pop %v187
    %v189 = vadd.f32 %v186, 1.0
    %v190 = vadd.f32 %v188, 1.0
    %v191 = vrcp.pop %v189
    %v192 = vmul.f32 1.0, %v191
    %v193 = vrcp.pop %v190
    %v194 = vmul.f32 1.0, %v193
    %v195 = vmul.f32 %v181, %v192
    %v196 = vmul.f32 %v182, %v194
    %v197 = vld [vmem:[#allocation5 + $0x3] sm:$0x1]
    %v198 = vld [vmem:[#allocation5 + $0x4] sm:$0x1]
    %v199 = vsel %vm94, %v195, 0.0
    %200 = vadd.xlane.f32.xlu0 %v199
    %v201 = vpop.xlane.xlu0 %200
    %v202 = vsel %vm94, %v196, 0.0
    %203 = vadd.xlane.f32.xlu0 %v202
    %v204 = vpop.xlane.xlu0 %203
    %v205 = vmul.f32 %v201, 0.015625
    %v206 = vmul.f32 %v204, 0.015625
    %v207 = vmul.f32 %v195, %v195
    %v208 = vmul.f32 %v196, %v196
    %v209 = vsel %vm94, %v207, 0.0
    %210 = vadd.xlane.f32.xlu0 %v209
    %v211 = vpop.xlane.xlu0 %210
    %v212 = vsel %vm94, %v208, 0.0
    %213 = vadd.xlane.f32.xlu0 %v212
    %v214 = vpop.xlane.xlu0 %213
    %v215 = vmul.f32 %v211, 0.015625
    %v216 = vmul.f32 %v214, 0.015625
    %v217 = vmul.f32 %v205, %v205
    %v218 = vmul.f32 %v206, %v206
    %v219 = vsub.f32 %v215, %v217
    %v220 = vsub.f32 %v216, %v218
    %v221 = vsub.f32 %v195, %v205
    %v222 = vsub.f32 %v196, %v206
    %v223 = vadd.f32 %v219, 1e-05
    %v224 = vadd.f32 %v220, 1e-05
    %v225 = vrsqrt.pop %v223
    %v226 = vrsqrt.pop %v224
    %v227 = vmul.f32 %v221, %v225
    %v228 = vmul.f32 %v222, %v226
    %v229 = vlaneseq
    %v230 = vshrl.u32 %v229, 7
    %v231 = vsub.s32 0, %v230
    %v232 = vrot.slane %v197, %v231
    %v233 = vmul.f32 %v227, %v232
    %v234 = vmul.f32 %v228, %v232
    %v235 = vlaneseq
    %v236 = vshrl.u32 %v235, 7
    %v237 = vsub.s32 0, %v236
    %v238 = vrot.slane %v198, %v237
    %v239 = vadd.f32 %v233, %v238
    %v240 = vadd.f32 %v234, %v238
    %s241 = scalar_lea.vmem [#allocation2], 32
    %v242 = vld [vmem:[%s241] sm:$0xf]
    %v243 = vld [vmem:[%s241 + $0x4] sm:$0xf]
    %v244 = vld [vmem:[%s241 + $0x8] sm:$0xf]
    %v245 = vld [vmem:[%s241 + $0xc] sm:$0xf]
    %v246 = vld [vmem:[%s241 + $0x10] sm:$0xf]
    %v247 = vld [vmem:[%s241 + $0x14] sm:$0xf]
    %v248 = vld [vmem:[%s241 + $0x18] sm:$0xf]
    %v249 = vld [vmem:[%s241 + $0x1c] sm:$0xf]
    %v250 = vpack.c.bf16 %v240, %v239
    %v251 = vld [vmem:[#allocation5 + $0x5] sm:$0x1]
    %v252 = vlaneseq
    %v253 = vshrl.u32 %v252, 7
    %v254 = vsub.s32 0, %v253
    %v255 = vrot.slane %v251, %v254
    %v264 = vunpack.c.l.b16 %v242
    %v265 = vunpack.c.l.b16 %v243
    %v266 = vunpack.c.l.b16 %v244
    %v267 = vunpack.c.l.b16 %v245
    %v268 = vunpack.c.l.b16 %v246
    %v269 = vunpack.c.l.b16 %v247
    %v270 = vunpack.c.l.b16 %v248
    %v271 = vunpack.c.l.b16 %v249
    %v272 = vpack.c.b16 %v265, %v264
    %v273 = vpack.c.b16 %v267, %v266
    %v274 = vpack.c.b16 %v269, %v268
    %v275 = vpack.c.b16 %v271, %v270
    %v281 = vsel %vm94, %v250, 0
    %283 = vmatprep.subr.bf16.mxu0 0
    %284 = vmatpush1.bf16.msra.mxu0 %v272
    %285 = vmatprep.subr.bf16.mxu0 0
    %286 = vmatpush1.bf16.msra.mxu0 %v273
    %287 = vmatprep.subr.bf16.mxu0 0
    %288 = vmatpush1.bf16.msra.mxu0 %v274
    %289 = vmatprep.subr.bf16.mxu0 0
    %290 = vmatpush1.bf16.msra.mxu0 %v275
    %291 = vmatprep.subr.bf16.mxu0 0
    %292 = vmatpush1.bf16.msra.mxu0 0
    %293 = vmatprep.subr.bf16.mxu0 0
    %294 = vmatpush1.bf16.msra.mxu0 0
    %295 = vmatprep.subr.bf16.mxu0 0
    %296 = vmatpush1.bf16.msra.mxu0 0
    %297 = vmatprep.subr.bf16.mxu0 0
    %298 = vmatpush1.bf16.msra.mxu0 0
    %299 = vmatprep.subr.bf16.mxu0 0
    %300 = vmatpush1.bf16.msra.mxu0 0
    %301 = vmatprep.subr.bf16.mxu0 0
    %302 = vmatpush1.bf16.msra.mxu0 0
    %303 = vmatprep.subr.bf16.mxu0 0
    %304 = vmatpush1.bf16.msra.mxu0 0
    %305 = vmatprep.subr.bf16.mxu0 0
    %306 = vmatpush1.bf16.msra.mxu0 0
    %307 = vmatprep.subr.bf16.mxu0 0
    %308 = vmatpush1.bf16.msra.mxu0 0
    %309 = vmatprep.subr.bf16.mxu0 0
    %310 = vmatpush1.bf16.msra.mxu0 0
    %311 = vmatprep.subr.bf16.mxu0 0
    %312 = vmatpush1.bf16.msra.mxu0 0
    %313 = vmatprep.subr.bf16.mxu0 0
    %314 = vmatpush1.bf16.msra.mxu0 0
    %315 = vmatprep.mubr.bf16.mxu0 0
    %316 = vmatmul.mubr.bf16.gmra.mrb[0].mxu0 %v281
    %v317 = vpop.f32.mrb[0].mxu0
    %v318 = vadd.f32 %v255, %v317
    %v319 = vpop.f32.mrb[0].mxu0
    %v320 = vpop.f32.mrb[0].mxu0
    %v321 = vadd.f32 %v255, %v320
    %v322 = vpop.f32.mrb[0].mxu0
    %323 = vdwg.mxu0
    %v324 = vxor.u32 %v318, 2147483648
    %v325 = vxor.u32 %v321, 2147483648
    %v326 = vmul.f32 %v324, 1.442695
    %v327 = vpow.pop %v326
    %v328 = vmul.f32 %v325, 1.442695
    %v329 = vpow.pop %v328
    %v330 = vadd.f32 %v327, 1.0
    %v331 = vadd.f32 %v329, 1.0
    %v332 = vrcp.pop %v330
    %v333 = vmul.f32 1.0, %v332
    %v334 = vrcp.pop %v331
    %v335 = vmul.f32 1.0, %v334
    %v336 = vmul.f32 %v318, %v333
    %v337 = vmul.f32 %v321, %v335
    %v338 = vld [vmem:[#allocation5 + $0x6] sm:$0x1]
    %v339 = vld [vmem:[#allocation5 + $0x7] sm:$0x1]
    %v340 = vsel %vm94, %v336, 0.0
    %341 = vadd.xlane.f32.xlu0 %v340
    %v342 = vpop.xlane.xlu0 %341
    %v343 = vsel %vm94, %v337, 0.0
    %344 = vadd.xlane.f32.xlu0 %v343
    %v345 = vpop.xlane.xlu0 %344
    %v346 = vmul.f32 %v342, 0.015625
    %v347 = vmul.f32 %v345, 0.015625
    %v348 = vmul.f32 %v336, %v336
    %v349 = vmul.f32 %v337, %v337
    %v350 = vsel %vm94, %v348, 0.0
    %351 = vadd.xlane.f32.xlu0 %v350
    %v352 = vpop.xlane.xlu0 %351
    %v353 = vsel %vm94, %v349, 0.0
    %354 = vadd.xlane.f32.xlu0 %v353
    %v355 = vpop.xlane.xlu0 %354
    %v356 = vmul.f32 %v352, 0.015625
    %v357 = vmul.f32 %v355, 0.015625
    %v358 = vmul.f32 %v346, %v346
    %v359 = vmul.f32 %v347, %v347
    %v360 = vsub.f32 %v356, %v358
    %v361 = vsub.f32 %v357, %v359
    %v362 = vsub.f32 %v336, %v346
    %v363 = vsub.f32 %v337, %v347
    %v364 = vadd.f32 %v360, 1e-05
    %v365 = vadd.f32 %v361, 1e-05
    %v366 = vrsqrt.pop %v364
    %v367 = vrsqrt.pop %v365
    %v368 = vmul.f32 %v362, %v366
    %v369 = vmul.f32 %v363, %v367
    %v370 = vlaneseq
    %v371 = vshrl.u32 %v370, 7
    %v372 = vsub.s32 0, %v371
    %v373 = vrot.slane %v338, %v372
    %v374 = vmul.f32 %v368, %v373
    %v375 = vmul.f32 %v369, %v373
    %v376 = vlaneseq
    %v377 = vshrl.u32 %v376, 7
    %v378 = vsub.s32 0, %v377
    %v379 = vrot.slane %v339, %v378
    %v380 = vadd.f32 %v374, %v379
    %v381 = vadd.f32 %v375, %v379
    %s382 = scalar_lea.vmem [#allocation2], 64
    %v383 = vld [vmem:[%s382] sm:$0xf]
    %v384 = vld [vmem:[%s382 + $0x4] sm:$0xf]
    %v385 = vld [vmem:[%s382 + $0x8] sm:$0xf]
    %v386 = vld [vmem:[%s382 + $0xc] sm:$0xf]
    %v387 = vld [vmem:[%s382 + $0x10] sm:$0xf]
    %v388 = vld [vmem:[%s382 + $0x14] sm:$0xf]
    %v389 = vld [vmem:[%s382 + $0x18] sm:$0xf]
    %v390 = vld [vmem:[%s382 + $0x1c] sm:$0xf]
    %v391 = vpack.c.bf16 %v381, %v380
    %v392 = vld [vmem:[#allocation5 + $0x8] sm:$0x1]
    %v393 = vlaneseq
    %v394 = vshrl.u32 %v393, 7
    %v395 = vsub.s32 0, %v394
    %v396 = vrot.slane %v392, %v395
    %v405 = vunpack.c.l.b16 %v383
    %v406 = vunpack.c.l.b16 %v384
    %v407 = vunpack.c.l.b16 %v385
    %v408 = vunpack.c.l.b16 %v386
    %v409 = vunpack.c.l.b16 %v387
    %v410 = vunpack.c.l.b16 %v388
    %v411 = vunpack.c.l.b16 %v389
    %v412 = vunpack.c.l.b16 %v390
    %v413 = vpack.c.b16 %v406, %v405
    %v414 = vpack.c.b16 %v408, %v407
    %v415 = vpack.c.b16 %v410, %v409
    %v416 = vpack.c.b16 %v412, %v411
    %v422 = vsel %vm94, %v391, 0
    %424 = vmatprep.subr.bf16.mxu0 0
    %425 = vmatpush1.bf16.msra.mxu0 %v413
    %426 = vmatprep.subr.bf16.mxu0 0
    %427 = vmatpush1.bf16.msra.mxu0 %v414
    %428 = vmatprep.subr.bf16.mxu0 0
    %429 = vmatpush1.bf16.msra.mxu0 %v415
    %430 = vmatprep.subr.bf16.mxu0 0
    %431 = vmatpush1.bf16.msra.mxu0 %v416
    %432 = vmatprep.subr.bf16.mxu0 0
    %433 = vmatpush1.bf16.msra.mxu0 0
    %434 = vmatprep.subr.bf16.mxu0 0
    %435 = vmatpush1.bf16.msra.mxu0 0
    %436 = vmatprep.subr.bf16.mxu0 0
    %437 = vmatpush1.bf16.msra.mxu0 0
    %438 = vmatprep.subr.bf16.mxu0 0
    %439 = vmatpush1.bf16.msra.mxu0 0
    %440 = vmatprep.subr.bf16.mxu0 0
    %441 = vmatpush1.bf16.msra.mxu0 0
    %442 = vmatprep.subr.bf16.mxu0 0
    %443 = vmatpush1.bf16.msra.mxu0 0
    %444 = vmatprep.subr.bf16.mxu0 0
    %445 = vmatpush1.bf16.msra.mxu0 0
    %446 = vmatprep.subr.bf16.mxu0 0
    %447 = vmatpush1.bf16.msra.mxu0 0
    %448 = vmatprep.subr.bf16.mxu0 0
    %449 = vmatpush1.bf16.msra.mxu0 0
    %450 = vmatprep.subr.bf16.mxu0 0
    %451 = vmatpush1.bf16.msra.mxu0 0
    %452 = vmatprep.subr.bf16.mxu0 0
    %453 = vmatpush1.bf16.msra.mxu0 0
    %454 = vmatprep.subr.bf16.mxu0 0
    %455 = vmatpush1.bf16.msra.mxu0 0
    %456 = vmatprep.mubr.bf16.mxu0 0
    %457 = vmatmul.mubr.bf16.gmra.mrb[0].mxu0 %v422
    %v458 = vpop.f32.mrb[0].mxu0
    %v459 = vadd.f32 %v396, %v458
    %v460 = vpop.f32.mrb[0].mxu0
    %v461 = vpop.f32.mrb[0].mxu0
    %v462 = vadd.f32 %v396, %v461
    %v463 = vpop.f32.mrb[0].mxu0
    %464 = vdwg.mxu0
    %v465 = vadd.f32 %v459, %v195
    %v466 = vadd.f32 %v462, %v196
    %v467 = vld [vmem:[#allocation5 + $0x9] sm:$0x1]
    %v468 = vld [vmem:[#allocation5 + $0xa] sm:$0x1]
    %v469 = vsel %vm94, %v465, 0.0
    %470 = vadd.xlane.f32.xlu0 %v469
    %v471 = vpop.xlane.xlu0 %470
    %v472 = vsel %vm94, %v466, 0.0
    %473 = vadd.xlane.f32.xlu0 %v472
    %v474 = vpop.xlane.xlu0 %473
    %v475 = vmul.f32 %v471, 0.015625
    %v476 = vmul.f32 %v474, 0.015625
    %v477 = vmul.f32 %v465, %v465
    %v478 = vmul.f32 %v466, %v466
    %v479 = vsel %vm94, %v477, 0.0
    %480 = vadd.xlane.f32.xlu0 %v479
    %v481 = vpop.xlane.xlu0 %480
    %v482 = vsel %vm94, %v478, 0.0
    %483 = vadd.xlane.f32.xlu0 %v482
    %v484 = vpop.xlane.xlu0 %483
    %v485 = vmul.f32 %v481, 0.015625
    %v486 = vmul.f32 %v484, 0.015625
    %v487 = vmul.f32 %v475, %v475
    %v488 = vmul.f32 %v476, %v476
    %v489 = vsub.f32 %v485, %v487
    %v490 = vsub.f32 %v486, %v488
    %v491 = vsub.f32 %v465, %v475
    %v492 = vsub.f32 %v466, %v476
    %v493 = vadd.f32 %v489, 1e-05
    %v494 = vadd.f32 %v490, 1e-05
    %v495 = vrsqrt.pop %v493
    %v496 = vrsqrt.pop %v494
    %v497 = vmul.f32 %v491, %v495
    %v498 = vmul.f32 %v492, %v496
    %v499 = vlaneseq
    %v500 = vshrl.u32 %v499, 7
    %v501 = vsub.s32 0, %v500
    %v502 = vrot.slane %v467, %v501
    %v503 = vmul.f32 %v497, %v502
    %v504 = vmul.f32 %v498, %v502
    %v505 = vlaneseq
    %v506 = vshrl.u32 %v505, 7
    %v507 = vsub.s32 0, %v506
    %v508 = vrot.slane %v468, %v507
    %v509 = vadd.f32 %v503, %v508
    %v510 = vadd.f32 %v504, %v508
    %s511 = scalar_lea.vmem [#allocation2], 96
    %v512 = vld [vmem:[%s511] sm:$0xf]
    %v513 = vld [vmem:[%s511 + $0x4] sm:$0xf]
    %v514 = vld [vmem:[%s511 + $0x8] sm:$0xf]
    %v515 = vld [vmem:[%s511 + $0xc] sm:$0xf]
    %v516 = vld [vmem:[%s511 + $0x10] sm:$0xf]
    %v517 = vld [vmem:[%s511 + $0x14] sm:$0xf]
    %v518 = vld [vmem:[%s511 + $0x18] sm:$0xf]
    %v519 = vld [vmem:[%s511 + $0x1c] sm:$0xf]
    %v520 = vpack.c.bf16 %v510, %v509
    %v521 = vld [vmem:[#allocation5 + $0xb] sm:$0x1]
    %v522 = vlaneseq
    %v523 = vshrl.u32 %v522, 7
    %v524 = vsub.s32 0, %v523
    %v525 = vrot.slane %v521, %v524
    %v534 = vunpack.c.l.b16 %v512
    %v535 = vunpack.c.l.b16 %v513
    %v536 = vunpack.c.l.b16 %v514
    %v537 = vunpack.c.l.b16 %v515
    %v538 = vunpack.c.l.b16 %v516
    %v539 = vunpack.c.l.b16 %v517
    %v540 = vunpack.c.l.b16 %v518
    %v541 = vunpack.c.l.b16 %v519
    %v542 = vpack.c.b16 %v535, %v534
    %v543 = vpack.c.b16 %v537, %v536
    %v544 = vpack.c.b16 %v539, %v538
    %v545 = vpack.c.b16 %v541, %v540
    %v551 = vsel %vm94, %v520, 0
    %553 = vmatprep.subr.bf16.mxu0 0
    %554 = vmatpush1.bf16.msra.mxu0 %v542
    %555 = vmatprep.subr.bf16.mxu0 0
    %556 = vmatpush1.bf16.msra.mxu0 %v543
    %557 = vmatprep.subr.bf16.mxu0 0
    %558 = vmatpush1.bf16.msra.mxu0 %v544
    %559 = vmatprep.subr.bf16.mxu0 0
    %560 = vmatpush1.bf16.msra.mxu0 %v545
    %561 = vmatprep.subr.bf16.mxu0 0
    %562 = vmatpush1.bf16.msra.mxu0 0
    %563 = vmatprep.subr.bf16.mxu0 0
    %564 = vmatpush1.bf16.msra.mxu0 0
    %565 = vmatprep.subr.bf16.mxu0 0
    %566 = vmatpush1.bf16.msra.mxu0 0
    %567 = vmatprep.subr.bf16.mxu0 0
    %568 = vmatpush1.bf16.msra.mxu0 0
    %569 = vmatprep.subr.bf16.mxu0 0
    %570 = vmatpush1.bf16.msra.mxu0 0
    %571 = vmatprep.subr.bf16.mxu0 0
    %572 = vmatpush1.bf16.msra.mxu0 0
    %573 = vmatprep.subr.bf16.mxu0 0
    %574 = vmatpush1.bf16.msra.mxu0 0
    %575 = vmatprep.subr.bf16.mxu0 0
    %576 = vmatpush1.bf16.msra.mxu0 0
    %577 = vmatprep.subr.bf16.mxu0 0
    %578 = vmatpush1.bf16.msra.mxu0 0
    %579 = vmatprep.subr.bf16.mxu0 0
    %580 = vmatpush1.bf16.msra.mxu0 0
    %581 = vmatprep.subr.bf16.mxu0 0
    %582 = vmatpush1.bf16.msra.mxu0 0
    %583 = vmatprep.subr.bf16.mxu0 0
    %584 = vmatpush1.bf16.msra.mxu0 0
    %585 = vmatprep.mubr.bf16.mxu0 0
    %586 = vmatmul.mubr.bf16.gmra.mrb[0].mxu0 %v551
    %v587 = vpop.f32.mrb[0].mxu0
    %v588 = vadd.f32 %v525, %v587
    %v589 = vpop.f32.mrb[0].mxu0
    %v590 = vpop.f32.mrb[0].mxu0
    %v591 = vadd.f32 %v525, %v590
    %v592 = vpop.f32.mrb[0].mxu0
    %593 = vdwg.mxu0
    %v594 = vxor.u32 %v588, 2147483648
    %v595 = vxor.u32 %v591, 2147483648
    %v596 = vmul.f32 %v594, 1.442695
    %v597 = vpow.pop %v596
    %v598 = vmul.f32 %v595, 1.442695
    %v599 = vpow.pop %v598
    %v600 = vadd.f32 %v597, 1.0
    %v601 = vadd.f32 %v599, 1.0
    %v602 = vrcp.pop %v600
    %v603 = vmul.f32 1.0, %v602
    %v604 = vrcp.pop %v601
    %v605 = vmul.f32 1.0, %v604
    %v606 = vmul.f32 %v588, %v603
    %v607 = vmul.f32 %v591, %v605
    %v608 = vld [vmem:[#allocation5 + $0xc] sm:$0x1]
    %v609 = vld [vmem:[#allocation5 + $0xd] sm:$0x1]
    %v610 = vsel %vm94, %v606, 0.0
    %611 = vadd.xlane.f32.xlu0 %v610
    %v612 = vpop.xlane.xlu0 %611
    %v613 = vsel %vm94, %v607, 0.0
    %614 = vadd.xlane.f32.xlu0 %v613
    %v615 = vpop.xlane.xlu0 %614
    %v616 = vmul.f32 %v612, 0.015625
    %v617 = vmul.f32 %v615, 0.015625
    %v618 = vmul.f32 %v606, %v606
    %v619 = vmul.f32 %v607, %v607
    %v620 = vsel %vm94, %v618, 0.0
    %621 = vadd.xlane.f32.xlu0 %v620
    %v622 = vpop.xlane.xlu0 %621
    %v623 = vsel %vm94, %v619, 0.0
    %624 = vadd.xlane.f32.xlu0 %v623
    %v625 = vpop.xlane.xlu0 %624
    %v626 = vmul.f32 %v622, 0.015625
    %v627 = vmul.f32 %v625, 0.015625
    %v628 = vmul.f32 %v616, %v616
    %v629 = vmul.f32 %v617, %v617
    %v630 = vsub.f32 %v626, %v628
    %v631 = vsub.f32 %v627, %v629
    %v632 = vsub.f32 %v606, %v616
    %v633 = vsub.f32 %v607, %v617
    %v634 = vadd.f32 %v630, 1e-05
    %v635 = vadd.f32 %v631, 1e-05
    %v636 = vrsqrt.pop %v634
    %v637 = vrsqrt.pop %v635
    %v638 = vmul.f32 %v632, %v636
    %v639 = vmul.f32 %v633, %v637
    %v640 = vlaneseq
    %v641 = vshrl.u32 %v640, 7
    %v642 = vsub.s32 0, %v641
    %v643 = vrot.slane %v608, %v642
    %v644 = vmul.f32 %v638, %v643
    %v645 = vmul.f32 %v639, %v643
    %v646 = vlaneseq
    %v647 = vshrl.u32 %v646, 7
    %v648 = vsub.s32 0, %v647
    %v649 = vrot.slane %v609, %v648
    %v650 = vadd.f32 %v644, %v649
    %v651 = vadd.f32 %v645, %v649
    %s652 = scalar_lea.vmem [#allocation2], 128
    %v653 = vld [vmem:[%s652] sm:$0xf]
    %v654 = vld [vmem:[%s652 + $0x4] sm:$0xf]
    %v655 = vld [vmem:[%s652 + $0x8] sm:$0xf]
    %v656 = vld [vmem:[%s652 + $0xc] sm:$0xf]
    %v657 = vld [vmem:[%s652 + $0x10] sm:$0xf]
    %v658 = vld [vmem:[%s652 + $0x14] sm:$0xf]
    %v659 = vld [vmem:[%s652 + $0x18] sm:$0xf]
    %v660 = vld [vmem:[%s652 + $0x1c] sm:$0xf]
    %v661 = vpack.c.bf16 %v651, %v650
    %v662 = vld [vmem:[#allocation5 + $0xe] sm:$0x1]
    %v663 = vlaneseq
    %v664 = vshrl.u32 %v663, 7
    %v665 = vsub.s32 0, %v664
    %v666 = vrot.slane %v662, %v665
    %v675 = vunpack.c.l.b16 %v653
    %v676 = vunpack.c.l.b16 %v654
    %v677 = vunpack.c.l.b16 %v655
    %v678 = vunpack.c.l.b16 %v656
    %v679 = vunpack.c.l.b16 %v657
    %v680 = vunpack.c.l.b16 %v658
    %v681 = vunpack.c.l.b16 %v659
    %v682 = vunpack.c.l.b16 %v660
    %v683 = vpack.c.b16 %v676, %v675
    %v684 = vpack.c.b16 %v678, %v677
    %v685 = vpack.c.b16 %v680, %v679
    %v686 = vpack.c.b16 %v682, %v681
    %v692 = vsel %vm94, %v661, 0
    %694 = vmatprep.subr.bf16.mxu0 0
    %695 = vmatpush1.bf16.msra.mxu0 %v683
    %696 = vmatprep.subr.bf16.mxu0 0
    %697 = vmatpush1.bf16.msra.mxu0 %v684
    %698 = vmatprep.subr.bf16.mxu0 0
    %699 = vmatpush1.bf16.msra.mxu0 %v685
    %700 = vmatprep.subr.bf16.mxu0 0
    %701 = vmatpush1.bf16.msra.mxu0 %v686
    %702 = vmatprep.subr.bf16.mxu0 0
    %703 = vmatpush1.bf16.msra.mxu0 0
    %704 = vmatprep.subr.bf16.mxu0 0
    %705 = vmatpush1.bf16.msra.mxu0 0
    %706 = vmatprep.subr.bf16.mxu0 0
    %707 = vmatpush1.bf16.msra.mxu0 0
    %708 = vmatprep.subr.bf16.mxu0 0
    %709 = vmatpush1.bf16.msra.mxu0 0
    %710 = vmatprep.subr.bf16.mxu0 0
    %711 = vmatpush1.bf16.msra.mxu0 0
    %712 = vmatprep.subr.bf16.mxu0 0
    %713 = vmatpush1.bf16.msra.mxu0 0
    %714 = vmatprep.subr.bf16.mxu0 0
    %715 = vmatpush1.bf16.msra.mxu0 0
    %716 = vmatprep.subr.bf16.mxu0 0
    %717 = vmatpush1.bf16.msra.mxu0 0
    %718 = vmatprep.subr.bf16.mxu0 0
    %719 = vmatpush1.bf16.msra.mxu0 0
    %720 = vmatprep.subr.bf16.mxu0 0
    %721 = vmatpush1.bf16.msra.mxu0 0
    %722 = vmatprep.subr.bf16.mxu0 0
    %723 = vmatpush1.bf16.msra.mxu0 0
    %724 = vmatprep.subr.bf16.mxu0 0
    %725 = vmatpush1.bf16.msra.mxu0 0
    %726 = vmatprep.mubr.bf16.mxu0 0
    %727 = vmatmul.mubr.bf16.gmra.mrb[0].mxu0 %v692
    %v728 = vpop.f32.mrb[0].mxu0
    %v729 = vadd.f32 %v666, %v728
    %v730 = vpop.f32.mrb[0].mxu0
    %v731 = vpop.f32.mrb[0].mxu0
    %v732 = vadd.f32 %v666, %v731
    %v733 = vpop.f32.mrb[0].mxu0
    %734 = vdwg.mxu0
    %v735 = vadd.f32 %v729, %v465
    %v736 = vadd.f32 %v732, %v466
    %v737 = vld [vmem:[#allocation5 + $0xf] sm:$0x1]
    %v738 = vld [vmem:[#allocation5 + $0x10] sm:$0x1]
    %v739 = vsel %vm94, %v735, 0.0
    %740 = vadd.xlane.f32.xlu0 %v739
    %v741 = vpop.xlane.xlu0 %740
    %v742 = vsel %vm94, %v736, 0.0
    %743 = vadd.xlane.f32.xlu0 %v742
    %v744 = vpop.xlane.xlu0 %743
    %v745 = vmul.f32 %v741, 0.015625
    %v746 = vmul.f32 %v744, 0.015625
    %v747 = vmul.f32 %v735, %v735
    %v748 = vmul.f32 %v736, %v736
    %v749 = vsel %vm94, %v747, 0.0
    %750 = vadd.xlane.f32.xlu0 %v749
    %v751 = vpop.xlane.xlu0 %750
    %v752 = vsel %vm94, %v748, 0.0
    %753 = vadd.xlane.f32.xlu0 %v752
    %v754 = vpop.xlane.xlu0 %753
    %v755 = vmul.f32 %v751, 0.015625
    %v756 = vmul.f32 %v754, 0.015625
    %v757 = vmul.f32 %v745, %v745
    %v758 = vmul.f32 %v746, %v746
    %v759 = vsub.f32 %v755, %v757
    %v760 = vsub.f32 %v756, %v758
    %v761 = vsub.f32 %v735, %v745
    %v762 = vsub.f32 %v736, %v746
    %v763 = vadd.f32 %v759, 1e-05
    %v764 = vadd.f32 %v760, 1e-05
    %v765 = vrsqrt.pop %v763
    %v766 = vrsqrt.pop %v764
    %v767 = vmul.f32 %v761, %v765
    %v768 = vmul.f32 %v762, %v766
    %v769 = vlaneseq
    %v770 = vshrl.u32 %v769, 7
    %v771 = vsub.s32 0, %v770
    %v772 = vrot.slane %v737, %v771
    %v773 = vmul.f32 %v767, %v772
    %v774 = vmul.f32 %v768, %v772
    %v775 = vlaneseq
    %v776 = vshrl.u32 %v775, 7
    %v777 = vsub.s32 0, %v776
    %v778 = vrot.slane %v738, %v777
    %v779 = vadd.f32 %v773, %v778
    %v780 = vadd.f32 %v774, %v778
    %s781 = scalar_lea.vmem [#allocation2], 160
    %v782 = vld [vmem:[%s781] sm:$0xf]
    %v783 = vld [vmem:[%s781 + $0x4] sm:$0xf]
    %v784 = vld [vmem:[%s781 + $0x8] sm:$0xf]
    %v785 = vld [vmem:[%s781 + $0xc] sm:$0xf]
    %v786 = vld [vmem:[%s781 + $0x10] sm:$0xf]
    %v787 = vld [vmem:[%s781 + $0x14] sm:$0xf]
    %v788 = vld [vmem:[%s781 + $0x18] sm:$0xf]
    %v789 = vld [vmem:[%s781 + $0x1c] sm:$0xf]
    %v790 = vpack.c.bf16 %v780, %v779
    %v791 = vld [vmem:[#allocation5 + $0x11] sm:$0x1]
    %v792 = vlaneseq
    %v793 = vshrl.u32 %v792, 7
    %v794 = vsub.s32 0, %v793
    %v795 = vrot.slane %v791, %v794
    %v804 = vunpack.c.l.b16 %v782
    %v805 = vunpack.c.l.b16 %v783
    %v806 = vunpack.c.l.b16 %v784
    %v807 = vunpack.c.l.b16 %v785
    %v808 = vunpack.c.l.b16 %v786
    %v809 = vunpack.c.l.b16 %v787
    %v810 = vunpack.c.l.b16 %v788
    %v811 = vunpack.c.l.b16 %v789
    %v812 = vpack.c.b16 %v805, %v804
    %v813 = vpack.c.b16 %v807, %v806
    %v814 = vpack.c.b16 %v809, %v808
    %v815 = vpack.c.b16 %v811, %v810
    %v821 = vsel %vm94, %v790, 0
    %823 = vmatprep.subr.bf16.mxu0 0
    %824 = vmatpush1.bf16.msra.mxu0 %v812
    %825 = vmatprep.subr.bf16.mxu0 0
    %826 = vmatpush1.bf16.msra.mxu0 %v813
    %827 = vmatprep.subr.bf16.mxu0 0
    %828 = vmatpush1.bf16.msra.mxu0 %v814
    %829 = vmatprep.subr.bf16.mxu0 0
    %830 = vmatpush1.bf16.msra.mxu0 %v815
    %831 = vmatprep.subr.bf16.mxu0 0
    %832 = vmatpush1.bf16.msra.mxu0 0
    %833 = vmatprep.subr.bf16.mxu0 0
    %834 = vmatpush1.bf16.msra.mxu0 0
    %835 = vmatprep.subr.bf16.mxu0 0
    %836 = vmatpush1.bf16.msra.mxu0 0
    %837 = vmatprep.subr.bf16.mxu0 0
    %838 = vmatpush1.bf16.msra.mxu0 0
    %839 = vmatprep.subr.bf16.mxu0 0
    %840 = vmatpush1.bf16.msra.mxu0 0
    %841 = vmatprep.subr.bf16.mxu0 0
    %842 = vmatpush1.bf16.msra.mxu0 0
    %843 = vmatprep.subr.bf16.mxu0 0
    %844 = vmatpush1.bf16.msra.mxu0 0
    %845 = vmatprep.subr.bf16.mxu0 0
    %846 = vmatpush1.bf16.msra.mxu0 0
    %847 = vmatprep.subr.bf16.mxu0 0
    %848 = vmatpush1.bf16.msra.mxu0 0
    %849 = vmatprep.subr.bf16.mxu0 0
    %850 = vmatpush1.bf16.msra.mxu0 0
    %851 = vmatprep.subr.bf16.mxu0 0
    %852 = vmatpush1.bf16.msra.mxu0 0
    %853 = vmatprep.subr.bf16.mxu0 0
    %854 = vmatpush1.bf16.msra.mxu0 0
    %855 = vmatprep.mubr.bf16.mxu0 0
    %856 = vmatmul.mubr.bf16.gmra.mrb[0].mxu0 %v821
    %v857 = vpop.f32.mrb[0].mxu0
    %v858 = vadd.f32 %v795, %v857
    %v859 = vpop.f32.mrb[0].mxu0
    %v860 = vpop.f32.mrb[0].mxu0
    %v861 = vadd.f32 %v795, %v860
    %v862 = vpop.f32.mrb[0].mxu0
    %863 = vdwg.mxu0
    %v864 = vxor.u32 %v858, 2147483648
    %v865 = vxor.u32 %v861, 2147483648
    %v866 = vmul.f32 %v864, 1.442695
    %v867 = vpow.pop %v866
    %v868 = vmul.f32 %v865, 1.442695
    %v869 = vpow.pop %v868
    %v870 = vadd.f32 %v867, 1.0
    %v871 = vadd.f32 %v869, 1.0
    %v872 = vrcp.pop %v870
    %v873 = vmul.f32 1.0, %v872
    %v874 = vrcp.pop %v871
    %v875 = vmul.f32 1.0, %v874
    %v876 = vmul.f32 %v858, %v873
    %v877 = vmul.f32 %v861, %v875
    %v878 = vld [vmem:[#allocation5 + $0x12] sm:$0x1]
    %v879 = vld [vmem:[#allocation5 + $0x13] sm:$0x1]
    %v880 = vsel %vm94, %v876, 0.0
    %881 = vadd.xlane.f32.xlu0 %v880
    %v882 = vpop.xlane.xlu0 %881
    %v883 = vsel %vm94, %v877, 0.0
    %884 = vadd.xlane.f32.xlu0 %v883
    %v885 = vpop.xlane.xlu0 %884
    %v886 = vmul.f32 %v882, 0.015625
    %v887 = vmul.f32 %v885, 0.015625
    %v888 = vmul.f32 %v876, %v876
    %v889 = vmul.f32 %v877, %v877
    %v890 = vsel %vm94, %v888, 0.0
    %891 = vadd.xlane.f32.xlu0 %v890
    %v892 = vpop.xlane.xlu0 %891
    %v893 = vsel %vm94, %v889, 0.0
    %894 = vadd.xlane.f32.xlu0 %v893
    %v895 = vpop.xlane.xlu0 %894
    %v896 = vmul.f32 %v892, 0.015625
    %v897 = vmul.f32 %v895, 0.015625
    %v898 = vmul.f32 %v886, %v886
    %v899 = vmul.f32 %v887, %v887
    %v900 = vsub.f32 %v896, %v898
    %v901 = vsub.f32 %v897, %v899
    %v902 = vsub.f32 %v876, %v886
    %v903 = vsub.f32 %v877, %v887
    %v904 = vadd.f32 %v900, 1e-05
    %v905 = vadd.f32 %v901, 1e-05
    %v906 = vrsqrt.pop %v904
    %v907 = vrsqrt.pop %v905
    %v908 = vmul.f32 %v902, %v906
    %v909 = vmul.f32 %v903, %v907
    %v910 = vlaneseq
    %v911 = vshrl.u32 %v910, 7
    %v912 = vsub.s32 0, %v911
    %v913 = vrot.slane %v878, %v912
    %v914 = vmul.f32 %v908, %v913
    %v915 = vmul.f32 %v909, %v913
    %v916 = vlaneseq
    %v917 = vshrl.u32 %v916, 7
    %v918 = vsub.s32 0, %v917
    %v919 = vrot.slane %v879, %v918
    %v920 = vadd.f32 %v914, %v919
    %v921 = vadd.f32 %v915, %v919
    %s922 = scalar_lea.vmem [#allocation2], 192
    %v923 = vld [vmem:[%s922] sm:$0xf]
    %v924 = vld [vmem:[%s922 + $0x4] sm:$0xf]
    %v925 = vld [vmem:[%s922 + $0x8] sm:$0xf]
    %v926 = vld [vmem:[%s922 + $0xc] sm:$0xf]
    %v927 = vld [vmem:[%s922 + $0x10] sm:$0xf]
    %v928 = vld [vmem:[%s922 + $0x14] sm:$0xf]
    %v929 = vld [vmem:[%s922 + $0x18] sm:$0xf]
    %v930 = vld [vmem:[%s922 + $0x1c] sm:$0xf]
    %v931 = vpack.c.bf16 %v921, %v920
    %v932 = vld [vmem:[#allocation5 + $0x14] sm:$0x1]
    %v933 = vlaneseq
    %v934 = vshrl.u32 %v933, 7
    %v935 = vsub.s32 0, %v934
    %v936 = vrot.slane %v932, %v935
    %v945 = vunpack.c.l.b16 %v923
    %v946 = vunpack.c.l.b16 %v924
    %v947 = vunpack.c.l.b16 %v925
    %v948 = vunpack.c.l.b16 %v926
    %v949 = vunpack.c.l.b16 %v927
    %v950 = vunpack.c.l.b16 %v928
    %v951 = vunpack.c.l.b16 %v929
    %v952 = vunpack.c.l.b16 %v930
    %v953 = vpack.c.b16 %v946, %v945
    %v954 = vpack.c.b16 %v948, %v947
    %v955 = vpack.c.b16 %v950, %v949
    %v956 = vpack.c.b16 %v952, %v951
    %v962 = vsel %vm94, %v931, 0
    %964 = vmatprep.subr.bf16.mxu0 0
    %965 = vmatpush1.bf16.msra.mxu0 %v953
    %966 = vmatprep.subr.bf16.mxu0 0
    %967 = vmatpush1.bf16.msra.mxu0 %v954
    %968 = vmatprep.subr.bf16.mxu0 0
    %969 = vmatpush1.bf16.msra.mxu0 %v955
    %970 = vmatprep.subr.bf16.mxu0 0
    %971 = vmatpush1.bf16.msra.mxu0 %v956
    %972 = vmatprep.subr.bf16.mxu0 0
    %973 = vmatpush1.bf16.msra.mxu0 0
    %974 = vmatprep.subr.bf16.mxu0 0
    %975 = vmatpush1.bf16.msra.mxu0 0
    %976 = vmatprep.subr.bf16.mxu0 0
    %977 = vmatpush1.bf16.msra.mxu0 0
    %978 = vmatprep.subr.bf16.mxu0 0
    %979 = vmatpush1.bf16.msra.mxu0 0
    %980 = vmatprep.subr.bf16.mxu0 0
    %981 = vmatpush1.bf16.msra.mxu0 0
    %982 = vmatprep.subr.bf16.mxu0 0
    %983 = vmatpush1.bf16.msra.mxu0 0
    %984 = vmatprep.subr.bf16.mxu0 0
    %985 = vmatpush1.bf16.msra.mxu0 0
    %986 = vmatprep.subr.bf16.mxu0 0
    %987 = vmatpush1.bf16.msra.mxu0 0
    %988 = vmatprep.subr.bf16.mxu0 0
    %989 = vmatpush1.bf16.msra.mxu0 0
    %990 = vmatprep.subr.bf16.mxu0 0
    %991 = vmatpush1.bf16.msra.mxu0 0
    %992 = vmatprep.subr.bf16.mxu0 0
    %993 = vmatpush1.bf16.msra.mxu0 0
    %994 = vmatprep.subr.bf16.mxu0 0
    %995 = vmatpush1.bf16.msra.mxu0 0
    %996 = vmatprep.mubr.bf16.mxu0 0
    %997 = vmatmul.mubr.bf16.gmra.mrb[0].mxu0 %v962
    %v998 = vpop.f32.mrb[0].mxu0
    %v999 = vadd.f32 %v936, %v998
    %v1000 = vpop.f32.mrb[0].mxu0
    %v1001 = vpop.f32.mrb[0].mxu0
    %v1002 = vadd.f32 %v936, %v1001
    %v1003 = vpop.f32.mrb[0].mxu0
    %1004 = vdwg.mxu0
    %v1005 = vadd.f32 %v999, %v735
    %v1006 = vadd.f32 %v1002, %v736
    %s1007 = scalar_lea.vmem [#allocation2], 224
    %v1008 = vld [vmem:[%s1007] sm:$0xf]
    %v1009 = vld [vmem:[%s1007 + $0x4] sm:$0xf]
    %v1010 = vld [vmem:[%s1007 + $0x8] sm:$0xf]
    %v1011 = vld [vmem:[%s1007 + $0xc] sm:$0xf]
    %v1012 = vld [vmem:[%s1007 + $0x10] sm:$0xf]
    %v1013 = vld [vmem:[%s1007 + $0x14] sm:$0xf]
    %v1014 = vld [vmem:[%s1007 + $0x18] sm:$0xf]
    %v1015 = vld [vmem:[%s1007 + $0x1c] sm:$0xf]
    %v1016 = vpack.c.bf16 %v1006, %v1005
    %v1017 = vld [vmem:[#allocation5 + $0x15] sm:$0x1]
    %v1018 = vlaneseq
    %v1019 = vshrl.u32 %v1018, 7
    %v1020 = vsub.s32 0, %v1019
    %v1021 = vrot.slane %v1017, %v1020
    %v1030 = vunpack.c.l.b16 %v1008
    %v1031 = vunpack.c.l.b16 %v1009
    %v1032 = vunpack.c.l.b16 %v1010
    %v1033 = vunpack.c.l.b16 %v1011
    %v1034 = vunpack.c.l.b16 %v1012
    %v1035 = vunpack.c.l.b16 %v1013
    %v1036 = vunpack.c.l.b16 %v1014
    %v1037 = vunpack.c.l.b16 %v1015
    %v1038 = vpack.c.b16 %v1031, %v1030
    %v1039 = vpack.c.b16 %v1033, %v1032
    %v1040 = vpack.c.b16 %v1035, %v1034
    %v1041 = vpack.c.b16 %v1037, %v1036
    %v1047 = vsel %vm94, %v1016, 0
    %1049 = vmatprep.subr.bf16.mxu0 0
    %1050 = vmatpush1.bf16.msra.mxu0 %v1038
    %1051 = vmatprep.subr.bf16.mxu0 0
    %1052 = vmatpush1.bf16.msra.mxu0 %v1039
    %1053 = vmatprep.subr.bf16.mxu0 0
    %1054 = vmatpush1.bf16.msra.mxu0 %v1040
    %1055 = vmatprep.subr.bf16.mxu0 0
    %1056 = vmatpush1.bf16.msra.mxu0 %v1041
    %1057 = vmatprep.subr.bf16.mxu0 0
    %1058 = vmatpush1.bf16.msra.mxu0 0
    %1059 = vmatprep.subr.bf16.mxu0 0
    %1060 = vmatpush1.bf16.msra.mxu0 0
    %1061 = vmatprep.subr.bf16.mxu0 0
    %1062 = vmatpush1.bf16.msra.mxu0 0
    %1063 = vmatprep.subr.bf16.mxu0 0
    %1064 = vmatpush1.bf16.msra.mxu0 0
    %1065 = vmatprep.subr.bf16.mxu0 0
    %1066 = vmatpush1.bf16.msra.mxu0 0
    %1067 = vmatprep.subr.bf16.mxu0 0
    %1068 = vmatpush1.bf16.msra.mxu0 0
    %1069 = vmatprep.subr.bf16.mxu0 0
    %1070 = vmatpush1.bf16.msra.mxu0 0
    %1071 = vmatprep.subr.bf16.mxu0 0
    %1072 = vmatpush1.bf16.msra.mxu0 0
    %1073 = vmatprep.subr.bf16.mxu0 0
    %1074 = vmatpush1.bf16.msra.mxu0 0
    %1075 = vmatprep.subr.bf16.mxu0 0
    %1076 = vmatpush1.bf16.msra.mxu0 0
    %1077 = vmatprep.subr.bf16.mxu0 0
    %1078 = vmatpush1.bf16.msra.mxu0 0
    %1079 = vmatprep.subr.bf16.mxu0 0
    %1080 = vmatpush1.bf16.msra.mxu0 0
    %1081 = vmatprep.mubr.bf16.mxu0 0
    %1082 = vmatmul.mubr.bf16.gmra.mrb[0].mxu0 %v1047
    %v1083 = vpop.f32.mrb[0].mxu0
    %v1084 = vadd.f32 %v1021, %v1083
    %v1085 = vpop.f32.mrb[0].mxu0
    %v1086 = vpop.f32.mrb[0].mxu0
    %v1087 = vadd.f32 %v1021, %v1086
    %v1088 = vpop.f32.mrb[0].mxu0
    %1089 = vdwg.mxu0
    %v1090 = vld [vmem:[#allocation5 + $0x16] sm:$0x1]
    %v1091 = vld [vmem:[#allocation5 + $0x17] sm:$0x1]
    %v1092 = vsel %vm94, %v1084, 0.0
    %1093 = vadd.xlane.f32.xlu0 %v1092
    %v1094 = vpop.xlane.xlu0 %1093
    %v1095 = vsel %vm94, %v1087, 0.0
    %1096 = vadd.xlane.f32.xlu0 %v1095
    %v1097 = vpop.xlane.xlu0 %1096
    %v1098 = vmul.f32 %v1094, 0.015625
    %v1099 = vmul.f32 %v1097, 0.015625
    %v1100 = vmul.f32 %v1084, %v1084
    %v1101 = vmul.f32 %v1087, %v1087
    %v1102 = vsel %vm94, %v1100, 0.0
    %1103 = vadd.xlane.f32.xlu0 %v1102
    %v1104 = vpop.xlane.xlu0 %1103
    %v1105 = vsel %vm94, %v1101, 0.0
    %1106 = vadd.xlane.f32.xlu0 %v1105
    %v1107 = vpop.xlane.xlu0 %1106
    %v1108 = vmul.f32 %v1104, 0.015625
    %v1109 = vmul.f32 %v1107, 0.015625
    %v1110 = vmul.f32 %v1098, %v1098
    %v1111 = vmul.f32 %v1099, %v1099
    %v1112 = vsub.f32 %v1108, %v1110
    %v1113 = vsub.f32 %v1109, %v1111
    %v1114 = vsub.f32 %v1084, %v1098
    %v1115 = vsub.f32 %v1087, %v1099
    %v1116 = vadd.f32 %v1112, 1e-05
    %v1117 = vadd.f32 %v1113, 1e-05
    %v1118 = vrsqrt.pop %v1116
    %v1119 = vrsqrt.pop %v1117
    %v1120 = vmul.f32 %v1114, %v1118
    %v1121 = vmul.f32 %v1115, %v1119
    %v1122 = vlaneseq
    %v1123 = vshrl.u32 %v1122, 7
    %v1124 = vsub.s32 0, %v1123
    %v1125 = vrot.slane %v1090, %v1124
    %v1126 = vmul.f32 %v1120, %v1125
    %v1127 = vmul.f32 %v1121, %v1125
    %v1128 = vlaneseq
    %v1129 = vshrl.u32 %v1128, 7
    %v1130 = vsub.s32 0, %v1129
    %v1131 = vrot.slane %v1091, %v1130
    %v1132 = vadd.f32 %v1126, %v1131
    %v1133 = vadd.f32 %v1127, %v1131
    %v1134 = vxor.u32 %v1132, 2147483648
    %v1135 = vxor.u32 %v1133, 2147483648
    %v1136 = vmul.f32 %v1134, 1.442695
    %v1137 = vpow.pop %v1136
    %v1138 = vmul.f32 %v1135, 1.442695
    %v1139 = vpow.pop %v1138
    %v1140 = vadd.f32 %v1137, 1.0
    %v1141 = vadd.f32 %v1139, 1.0
    %v1142 = vrcp.pop %v1140
    %v1143 = vmul.f32 1.0, %v1142
    %v1144 = vrcp.pop %v1141
    %v1145 = vmul.f32 1.0, %v1144
    %v1146 = vmul.f32 %v1132, %v1143
    %v1147 = vmul.f32 %v1133, %v1145
    %v1148 = vld [vmem:[%s3] sm:$0xf]
    %v1149 = vld [vmem:[%s3 + $0x4] sm:$0xf]
    %v1150 = vld [vmem:[%s3 + $0x8] sm:$0xf]
    %v1151 = vld [vmem:[%s3 + $0xc] sm:$0xf]
    %v1152 = vld [vmem:[%s3 + $0x10] sm:$0xf]
    %v1153 = vld [vmem:[%s3 + $0x14] sm:$0xf]
    %v1154 = vld [vmem:[%s3 + $0x18] sm:$0xf]
    %v1155 = vld [vmem:[%s3 + $0x1c] sm:$0xf]
    %v1156 = vpack.c.bf16 %v1147, %v1146
    %v1157 = vld [vmem:[%s4] sm:$0x1]
    %v1158 = vlaneseq
    %v1159 = vshrl.u32 %v1158, 7
    %v1160 = vsub.s32 0, %v1159
    %v1161 = vrot.slane %v1157, %v1160
    %v1170 = vunpack.c.l.b16 %v1148
    %v1171 = vunpack.c.l.b16 %v1149
    %v1172 = vunpack.c.l.b16 %v1150
    %v1173 = vunpack.c.l.b16 %v1151
    %v1174 = vunpack.c.l.b16 %v1152
    %v1175 = vunpack.c.l.b16 %v1153
    %v1176 = vunpack.c.l.b16 %v1154
    %v1177 = vunpack.c.l.b16 %v1155
    %v1178 = vpack.c.b16 %v1171, %v1170
    %v1179 = vpack.c.b16 %v1173, %v1172
    %v1180 = vpack.c.b16 %v1175, %v1174
    %v1181 = vpack.c.b16 %v1177, %v1176
    %v1187 = vsel %vm94, %v1156, 0
    %1189 = vmatprep.subr.bf16.mxu0 0
    %1190 = vmatpush1.bf16.msra.mxu0 %v1178
    %1191 = vmatprep.subr.bf16.mxu0 0
    %1192 = vmatpush1.bf16.msra.mxu0 %v1179
    %1193 = vmatprep.subr.bf16.mxu0 0
    %1194 = vmatpush1.bf16.msra.mxu0 %v1180
    %1195 = vmatprep.subr.bf16.mxu0 0
    %1196 = vmatpush1.bf16.msra.mxu0 %v1181
    %1197 = vmatprep.subr.bf16.mxu0 0
    %1198 = vmatpush1.bf16.msra.mxu0 0
    %1199 = vmatprep.subr.bf16.mxu0 0
    %1200 = vmatpush1.bf16.msra.mxu0 0
    %1201 = vmatprep.subr.bf16.mxu0 0
    %1202 = vmatpush1.bf16.msra.mxu0 0
    %1203 = vmatprep.subr.bf16.mxu0 0
    %1204 = vmatpush1.bf16.msra.mxu0 0
    %1205 = vmatprep.subr.bf16.mxu0 0
    %1206 = vmatpush1.bf16.msra.mxu0 0
    %1207 = vmatprep.subr.bf16.mxu0 0
    %1208 = vmatpush1.bf16.msra.mxu0 0
    %1209 = vmatprep.subr.bf16.mxu0 0
    %1210 = vmatpush1.bf16.msra.mxu0 0
    %1211 = vmatprep.subr.bf16.mxu0 0
    %1212 = vmatpush1.bf16.msra.mxu0 0
    %1213 = vmatprep.subr.bf16.mxu0 0
    %1214 = vmatpush1.bf16.msra.mxu0 0
    %1215 = vmatprep.subr.bf16.mxu0 0
    %1216 = vmatpush1.bf16.msra.mxu0 0
    %1217 = vmatprep.subr.bf16.mxu0 0
    %1218 = vmatpush1.bf16.msra.mxu0 0
    %1219 = vmatprep.subr.bf16.mxu0 0
    %1220 = vmatpush1.bf16.msra.mxu0 0
    %1221 = vmatprep.mubr.bf16.mxu0 0
    %1222 = vmatmul.mubr.bf16.gmra.mrb[0].mxu0 %v1187
    %v1223 = vpop.f32.mrb[0].mxu0
    %v1224 = vadd.f32 %v1161, %v1223
    %v1225 = vpop.f32.mrb[0].mxu0
    %v1226 = vpop.f32.mrb[0].mxu0
    %v1227 = vadd.f32 %v1161, %v1226
    %v1228 = vpop.f32.mrb[0].mxu0
    %1229 = vdwg.mxu0
    %v1230 = vld [vmem:[%s4 + $0x1] sm:$0x1]
    %v1231 = vld [vmem:[%s4 + $0x2] sm:$0x1]
    %1232 = vadd.xlane.f32.xlu0 %v1224
    %v1233 = vpop.xlane.xlu0 %1232
    %1234 = vadd.xlane.f32.xlu0 %v1227
    %v1235 = vpop.xlane.xlu0 %1234
    %v1236 = vmul.f32 %v1233, 0.03125
    %v1237 = vmul.f32 %v1235, 0.03125
    %v1238 = vmul.f32 %v1224, %v1224
    %v1239 = vmul.f32 %v1227, %v1227
    %1240 = vadd.xlane.f32.xlu0 %v1238
    %v1241 = vpop.xlane.xlu0 %1240
    %1242 = vadd.xlane.f32.xlu0 %v1239
    %v1243 = vpop.xlane.xlu0 %1242
    %v1244 = vmul.f32 %v1241, 0.03125
    %v1245 = vmul.f32 %v1243, 0.03125
    %v1246 = vmul.f32 %v1236, %v1236
    %v1247 = vmul.f32 %v1237, %v1237
    %v1248 = vsub.f32 %v1244, %v1246
    %v1249 = vsub.f32 %v1245, %v1247
    %v1250 = vsub.f32 %v1224, %v1236
    %v1251 = vsub.f32 %v1227, %v1237
    %v1252 = vadd.f32 %v1248, 1e-05
    %v1253 = vadd.f32 %v1249, 1e-05
    %v1254 = vrsqrt.pop %v1252
    %v1255 = vrsqrt.pop %v1253
    %v1256 = vmul.f32 %v1250, %v1254
    %v1257 = vmul.f32 %v1251, %v1255
    %v1258 = vlaneseq
    %v1259 = vshrl.u32 %v1258, 7
    %v1260 = vsub.s32 0, %v1259
    %v1261 = vrot.slane %v1230, %v1260
    %v1262 = vmul.f32 %v1256, %v1261
    %v1263 = vmul.f32 %v1257, %v1261
    %v1264 = vlaneseq
    %v1265 = vshrl.u32 %v1264, 7
    %v1266 = vsub.s32 0, %v1265
    %v1267 = vrot.slane %v1231, %v1266
    %v1268 = vadd.f32 %v1262, %v1267
    %v1269 = vadd.f32 %v1263, %v1267
    %1270 = vst [vmem:[#allocation7] sm:$0xff] %v1268
    %1271 = vst [vmem:[#allocation7 + $0x8] sm:$0xff] %v1269
    // Predicated region
    $region30: #{aicube_translate.1} parent=1 // pred_check
      _
    $region31: #{aicube_translate.1} parent=1 // pred_check_branch
      %1273 = sbr.rel (0) target = $region33
    $region32: #{aicube_translate.1} parent=1 // pred_region
      %s1275 = ssub.s32 256, 256
      %1276 = vsyncadd [#allocation4], %s1275
      %s1277 = sshll.u32 [#allocation7], 4
      %s1278 = int_to_ptr.vmem [resolvable:$true] %s1277
      %1283 = dma.vmem_to_hbm [thread:$0]  %s1278, 256, %s5, [#allocation4], 128, 128, 8
    $region33: #{aicube_translate.1} parent=1 // pred_fallthru
      _
    // Predicated region
    $region34: #{aicube_translate.1} parent=1 // pred_check
      _
    $region35: #{aicube_translate.1} parent=1 // pred_check_branch
      %1285 = sbr.rel (0) target = $region37
    $region36: #{aicube_translate.1} parent=1 // pred_region
      %1286 = dma.done [#allocation4], 256
    $region37: #{aicube_translate.1} parent=1 // pred_fallthru
      _
    %1287 = vsyncpa [#allocation3], 1
    %1288 = vsyncpa [#allocation6], 1
    %1289 = vsyncpa [#allocation4], 1

</llo_original>
